<compile_context>
chip_gen: v6e
topology: v6e:2x2x1
jax: 0.10.0
libtpu: 0.0.40
codegen_flags: <defaults>
</compile_context>

<pallas_src>
import functools

import jax
import jax.numpy as jnp
from jax import lax
from jax.experimental import pallas as pl
from jax.experimental.pallas import tpu as pltpu

NEG_SLOPE = 0.01      # nn.LeakyReLU default
NEG_BIG = -1e30       # finite "-inf" (avoids inf-inf NaNs in the online max)


def _leaky_relu(x):
    return jnp.where(x > 0, x, NEG_SLOPE * x)


def _snapshot_weighter_kernel(
        # --- edge-tiled inputs ---
        h_src_ref,       # [tE, D]  papers[selected_indicator]        (mxu dtype)
        type_src_ref,    # [tE, D]  summed node-attr embeddings       (mxu dtype)
        seg_ref,         # [S, tE]  one-hot: seg[s, j]=1 iff index[j]==s (mxu dtype)
        # --- resident inputs ---
        snap_ref,        # [S, D]   snapshots (h_dst)                 (mxu dtype)
        dst_type_ref,    # [S, D]   snapshot_type_emb(cur_types)      (mxu dtype)
        w_src_ref, b_src_ref,      # [D, D], [1, D] (mxu dtype)
        w_dst_ref, b_dst_ref,      # [D, D], [1, D] (mxu dtype)
        w_out_ref, b_out_ref,      # [D, D] (mxu dtype), [1, D] (f32)
        attn_hm_ref,     # [D, H]   head_map * attn  (folded attention)
        attn_t_hm_ref,   # [D, H]   head_map * attn_t
        head_map_ref,    # [D, H]   one-hot: feature d belongs to head d // Dh
        # --- output ---
        out_ref,         # [S, D]  f32
        # --- scratch (persist across edge tiles) ---
        slab_scr,        # [S, 2D] mxu dtype:  [ fc_dst(snapshots) | dst_type ]
        m_scr,           # [S, H]  f32  running segment max
        l_scr,           # [S, H]  f32  running softmax denominator
        acc_scr,         # [S, D]  f32  running weighted-message sum
        *, n_heads, feat_dim, mxu_dtype, approx_recip):
    f32 = jnp.float32
    md = mxu_dtype
    D = feat_dim
    t = pl.program_id(0)
    cdims_s = (((0,), (0,)), ((), ()))   # contract dim 0 of both operands

    # ---- one-time init: fused [S, 2D] destination slab + accumulators ----
    @pl.when(t == 0)
    def _init():
        fdst = (jnp.dot(snap_ref[...], w_dst_ref[...],
                        preferred_element_type=f32).astype(md)
                + b_dst_ref[...])                                        # [S, D]
        slab_scr[...] = jnp.concatenate([fdst, dst_type_ref[...]], axis=1)
        m_scr[...] = jnp.full_like(m_scr, NEG_BIG)
        l_scr[...] = jnp.zeros_like(l_scr)
        acc_scr[...] = jnp.zeros_like(acc_scr)

    seg = seg_ref[...]                                                   # [S, tE] md
    seg_f32 = seg.astype(f32)
    neg_mask = jnp.where(seg_f32 > 0.0, 0.0, NEG_BIG)                    # [S, tE]
    pad_neg = jnp.max(neg_mask, axis=0, keepdims=True)                   # [1, tE]: 0 valid / NEG_BIG padded

    # ---- per-edge src projection + fused one-hot gather of dst rows (MXU) ----
    feat_src = (jnp.dot(h_src_ref[...], w_src_ref[...],
                        preferred_element_type=f32).astype(md)
                + b_src_ref[...])                                        # [tE, D] md
    gathered = lax.dot_general(seg, slab_scr[...], cdims_s,
                               preferred_element_type=f32).astype(md)    # [tE, 2D]
    feat_dst = gathered[:, :D]                                           # [tE, D]
    type_dst = gathered[:, D:]                                           # [tE, D]

    # ---- attention logits, lane-dense [H, tE]; attn folded into head map ----
    s_feat = _leaky_relu(feat_src + feat_dst)                            # [tE, D] md
    t_feat = _leaky_relu(type_src_ref[...] + type_dst)                   # [tE, D] md
    e_he = (lax.dot_general(attn_hm_ref[...], s_feat,
                            (((0,), (1,)), ((), ())),
                            preferred_element_type=f32)
            + lax.dot_general(attn_t_hm_ref[...], t_feat,
                              (((0,), (1,)), ((), ())),
                              preferred_element_type=f32))               # [H, tE] f32
    e_he = e_he + pad_neg                                                # mask padded edges

    # ---- online segment softmax update (all statistics in f32) ----
    m_old = m_scr[...]                                                   # [S, H]
    masked = e_he[None, :, :] + neg_mask[:, None, :]                     # [S, H, tE]
    tile_max = jnp.max(masked, axis=-1)                                  # [S, H]
    m_new = jnp.maximum(m_old, tile_max)                                 # [S, H]
    corr = jnp.exp(m_old - m_new)                                        # [S, H] f32

    # broadcast the per-segment max back to edges through the one-hot slab
    edge_m = lax.dot_general(m_new, seg_f32, cdims_s,
                             preferred_element_type=f32)                 # [H, tE] f32
    p = jnp.exp(e_he - edge_m).astype(md)                                # [H, tE] (padded cols -> 0)

    tile_sum = lax.dot_general(seg, p, (((1,), (1,)), ((), ())),
                               preferred_element_type=f32)               # [S, H]
    l_scr[...] = corr * l_scr[...] + tile_sum

    # broadcast p to the feature axis (one-hot head map) and accumulate messages
    p_feat = lax.dot_general(p, head_map_ref[...], (((0,), (1,)), ((), ())),
                             preferred_element_type=md)                  # [tE, D] md
    x = feat_src * p_feat                                                # [tE, D] md
    msg = lax.dot_general(seg, x, (((1,), (0,)), ((), ())),
                          preferred_element_type=f32)                    # [S, D] f32
    corr_d = lax.dot_general(corr, head_map_ref[...].astype(f32),
                             (((1,), (1,)), ((), ())),
                             preferred_element_type=f32)                 # [S, D] f32
    acc_scr[...] = corr_d * acc_scr[...] + msg
    m_scr[...] = m_new

    # ---- finalize: normalize once per (segment, head) + fc_out ----
    @pl.when(t == pl.num_programs(0) - 1)
    def _done():
        l = l_scr[...]
        inv_l = jnp.where(l > 0.0, pl.reciprocal(l, approx=approx_recip), 0.0)
        inv_d = lax.dot_general(inv_l, head_map_ref[...].astype(f32),
                                (((1,), (1,)), ((), ())),
                                preferred_element_type=f32)              # [S, D]
        sum_out = (acc_scr[...] * inv_d).astype(md)                      # [S, D]
        out_ref[...] = (jnp.dot(sum_out, w_out_ref[...],
                                preferred_element_type=f32)
                        + b_out_ref[...]).astype(out_ref.dtype)


def snapshot_weighter_pallas(h_src_sel, type_src, snapshots, dst_type,
                             w_src, b_src, w_dst, b_dst, w_out, b_out,
                             attn, attn_t, index,
                             *, n_heads, tile_e=2048, mxu_dtype=jnp.bfloat16):
    E, D = h_src_sel.shape
    S = snapshots.shape[0]
    H = n_heads
    assert D % H == 0
    dh = D // H
    f32 = jnp.float32
    md = jnp.dtype(mxu_dtype)
    approx_recip = bool(md != jnp.dtype(jnp.float32))

    # clamp the (lane-aligned) edge tile to the padded problem size
    e_ceil = max(128, ((E + 127) // 128) * 128)
    tile_e = max(128, (min(int(tile_e), e_ceil) // 128) * 128)
    num_tiles = int(pl.cdiv(max(E, 1), tile_e))
    e_pad = num_tiles * tile_e
    pad = e_pad - E

    # zero-pad the edge axis; padded edges get an all-zero one-hot column so they
    # contribute nothing to any segment (and are NEG_BIG-masked in the kernel).
    h_src_p = jnp.pad(h_src_sel, ((0, pad), (0, 0))).astype(md)
    type_src_p = jnp.pad(type_src, ((0, pad), (0, 0))).astype(md)
    index_p = jnp.pad(index.astype(jnp.int32), ((0, pad),), constant_values=-1)
    seg = (jnp.arange(S, dtype=jnp.int32)[:, None] == index_p[None, :]).astype(md)

    head_map = (jnp.arange(D, dtype=jnp.int32)[:, None] // dh ==
                jnp.arange(H, dtype=jnp.int32)[None, :]).astype(f32)      # [D, H]
    attn_hm = (head_map * attn.reshape(D)[:, None]).astype(md)            # fold attn
    attn_t_hm = (head_map * attn_t.reshape(D)[:, None]).astype(md)        # fold attn_t

    args = (
        h_src_p, type_src_p, seg,
        snapshots.astype(md), dst_type.astype(md),
        w_src.astype(md), b_src.reshape(1, D).astype(md),
        w_dst.astype(md), b_dst.reshape(1, D).astype(md),
        w_out.astype(md), b_out.reshape(1, D).astype(f32),
        attn_hm, attn_t_hm, head_map.astype(md),
    )

    edge_spec = pl.BlockSpec((tile_e, D), lambda t: (t, 0))
    seg_spec = pl.BlockSpec((S, tile_e), lambda t: (0, t))

    def resident_spec(shape):
        return pl.BlockSpec(shape, lambda t: (0,) * len(shape))

    in_specs = [edge_spec, edge_spec, seg_spec] + [resident_spec(a.shape)
                                                   for a in args[3:]]

    # VMEM budget: double-buffered edge streams + residents + scratch + output.
    bpe = md.itemsize
    stream_bytes = 2 * (2 * tile_e * D + S * tile_e) * bpe
    resident_bytes = 2 * ((2 * S * D + 3 * D * D + 3 * D * H + 3 * D) * bpe + D * 4)
    scratch_bytes = S * 2 * D * bpe + (2 * S * H + S * D) * 4
    out_bytes = 2 * S * D * 4
    est = stream_bytes + resident_bytes + scratch_bytes + out_bytes
    vmem_limit = int(min(64 * 2**20, max(32 * 2**20, 2 * est + (8 << 20))))

    grid_spec = pltpu.PrefetchScalarGridSpec(
        num_scalar_prefetch=0,
        grid=(num_tiles,),
        in_specs=in_specs,
        out_specs=pl.BlockSpec((S, D), lambda t: (0, 0)),
        scratch_shapes=[
            pltpu.VMEM((S, 2 * D), md),   # [fc_dst(snapshots) | dst_type] slab
            pltpu.VMEM((S, H), f32),      # running max
            pltpu.VMEM((S, H), f32),      # running denominator
            pltpu.VMEM((S, D), f32),      # running weighted-message accumulator
        ],
    )

    kernel = functools.partial(_snapshot_weighter_kernel,
                               n_heads=H, feat_dim=D, mxu_dtype=md,
                               approx_recip=approx_recip)
    return pl.pallas_call(
        kernel,
        out_shape=jax.ShapeDtypeStruct((S, D), f32),
        grid_spec=grid_spec,
        compiler_params=pltpu.CompilerParams(
            dimension_semantics=("arbitrary",),   # edge-tile axis is a reduction
            vmem_limit_bytes=vmem_limit),
    )(*args)


# -------------------------- reference (pure JAX) ----------------------------
def snapshot_weighter_ref(h_src_sel, type_src, snapshots, dst_type,
                          w_src, b_src, w_dst, b_dst, w_out, b_out,
                          attn, attn_t, index, *, n_heads):
    E, D = h_src_sel.shape
    S = snapshots.shape[0]
    dh = D // n_heads
    feat_src = (h_src_sel @ w_src + b_src).reshape(E, n_heads, dh)
    feat_dst = ((snapshots @ w_dst + b_dst)[index]).reshape(E, n_heads, dh)
    e = feat_src + feat_dst
    e = jnp.where(e > 0, e, NEG_SLOPE * e)
    e = (e * attn).sum(-1)
    st = (type_src + dst_type[index]).reshape(E, n_heads, dh)
    st = jnp.where(st > 0, st, NEG_SLOPE * st)
    e = e + (st * attn_t).sum(-1)                                  # [E, H]
    seg_max = jax.ops.segment_max(e, index, num_segments=S)
    exp_e = jnp.exp(e - seg_max[index])
    seg_sum = jax.ops.segment_sum(exp_e, index, num_segments=S)
    a = exp_e / seg_sum[index]
    x = feat_src * a[:, :, None]
    sum_out = jax.ops.segment_sum(x.reshape(E, D), index, num_segments=S)
    return sum_out @ w_out + b_out


if __name__ == "__main__":
    key = jax.random.PRNGKey(0)
    ks = jax.random.split(key, 16)

    # ---- sizes (small, but 2 edge tiles so the online softmax crosses tiles) ----
    D = 32                 # out_feats
    H = 4                  # n_heads
    Dh = D // H
    snapshot_types = 5
    S = 4                  # snapshots
    E = 160                # selected papers (edges), 40 per snapshot
    N_papers = 200
    TILE_E = 128           # -> E padded to 256, grid of 2 edge tiles

    # ---- "module" parameters ----
    w_src = jax.random.normal(ks[0], (D, D), jnp.float32) * 0.1   # x @ W layout
    b_src = jax.random.normal(ks[1], (D,), jnp.float32) * 0.1
    w_dst = jax.random.normal(ks[2], (D, D), jnp.float32) * 0.1
    b_dst = jax.random.normal(ks[3], (D,), jnp.float32) * 0.1
    w_out = jax.random.normal(ks[4], (D, D), jnp.float32) * 0.1
    b_out = jax.random.normal(ks[5], (D,), jnp.float32) * 0.1
    attn = jax.random.normal(ks[6], (1, H, Dh), jnp.float32) * 0.5
    attn_t = jax.random.normal(ks[7], (1, H, Dh), jnp.float32) * 0.5

    snap_emb = jax.random.normal(ks[8], (snapshot_types + 1, D), jnp.float32) * 0.1
    snap_emb = snap_emb.at[-1].set(0.0)                                  # padding_idx=-1
    emb_is_cite = (jax.random.normal(ks[9], (2, D), jnp.float32) * 0.1).at[0].set(0.0)
    emb_is_ref = (jax.random.normal(ks[10], (2, D), jnp.float32) * 0.1).at[0].set(0.0)
    emb_is_target = (jax.random.normal(ks[11], (2, D), jnp.float32) * 0.1).at[0].set(0.0)

    # ---- inputs ----
    papers = jax.random.normal(ks[12], (N_papers, D), jnp.float32)       # h_src
    snapshots = jax.random.normal(ks[13], (S, D), jnp.float32)           # h_dst
    cur_snapshot_types = jax.random.randint(ks[14], (S,), 0, snapshot_types)
    is_cite = jax.random.randint(ks[15], (N_papers,), 0, 2)

    selected_indicator = jnp.arange(E, dtype=jnp.int32)
    index = jnp.repeat(jnp.arange(S, dtype=jnp.int32), E // S)           # sorted segment ids

    # ---- glue (gathers / embedding lookups), plain JAX ----
    h_src_sel = papers[selected_indicator]
    is_cite_sel = is_cite[selected_indicator]
    # note: the original module indexes all three attr embeddings with is_cite.
    type_src = (emb_is_cite[is_cite_sel] + emb_is_ref[is_cite_sel]
                + emb_is_target[is_cite_sel])                            # [E, D]
    dst_type = snap_emb[cur_snapshot_types]                              # [S, D]

    run = functools.partial(
        snapshot_weighter_pallas,
        h_src_sel, type_src, snapshots, dst_type,
        w_src, b_src, w_dst, b_dst, w_out, b_out,
        attn, attn_t, index, n_heads=H)

    # multi-tile (online softmax crosses tiles) in f32 and bf16, plus default tile
    out_f32 = jax.block_until_ready(run(tile_e=TILE_E, mxu_dtype=jnp.float32))
    out_bf16 = jax.block_until_ready(run(tile_e=TILE_E, mxu_dtype=jnp.bfloat16))
    out_def = jax.block_until_ready(run(mxu_dtype=jnp.float32))   # tile_e clamped, 1 tile

    ref = snapshot_weighter_ref(h_src_sel, type_src, snapshots, dst_type,
                                w_src, b_src, w_dst, b_dst, w_out, b_out,
                                attn, attn_t, index, n_heads=H)

    assert out_f32.shape == (S, D)
    assert jnp.allclose(out_f32, ref, rtol=1e-3, atol=1e-3), "f32 kernel mismatch"
    assert jnp.allclose(out_def, ref, rtol=1e-3, atol=1e-3), "default-tile kernel mismatch"
    assert jnp.allclose(out_bf16, ref, rtol=5e-2, atol=5e-2), "bf16 kernel mismatch"
    print("KERNEL_OK")
</pallas_src>

<mosaic_0001>
module attributes {stable_mosaic.version = 11 : i64} {
  func.func @_snapshot_weighter_kernel(%arg0: i32, %arg1: memref<128x32xf32, #tpu.memory_space<vmem>>, %arg2: memref<128x32xf32, #tpu.memory_space<vmem>>, %arg3: memref<4x128xf32, #tpu.memory_space<vmem>>, %arg4: memref<4x32xf32, #tpu.memory_space<vmem>>, %arg5: memref<4x32xf32, #tpu.memory_space<vmem>>, %arg6: memref<32x32xf32, #tpu.memory_space<vmem>>, %arg7: memref<1x32xf32, #tpu.memory_space<vmem>>, %arg8: memref<32x32xf32, #tpu.memory_space<vmem>>, %arg9: memref<1x32xf32, #tpu.memory_space<vmem>>, %arg10: memref<32x32xf32, #tpu.memory_space<vmem>>, %arg11: memref<1x32xf32, #tpu.memory_space<vmem>>, %arg12: memref<32x4xf32, #tpu.memory_space<vmem>>, %arg13: memref<32x4xf32, #tpu.memory_space<vmem>>, %arg14: memref<32x4xf32, #tpu.memory_space<vmem>>, %arg15: memref<4x32xf32, #tpu.memory_space<vmem>>, %arg16: memref<4x64xf32, #tpu.memory_space<vmem>>, %arg17: memref<4x4xf32, #tpu.memory_space<vmem>>, %arg18: memref<4x4xf32, #tpu.memory_space<vmem>>, %arg19: memref<4x32xf32, #tpu.memory_space<vmem>>) attributes {dimension_semantics = [#tpu.dimension_semantics<arbitrary>], iteration_bounds = array<i64: 2>, scalar_prefetch = 0 : i64, scratch_operands = 4 : i64, tpu.core_type = #tpu.core_type<tc>, window_params = [{transform_indices = @transform_0, window_bounds = array<i64: 128, 32>}, {transform_indices = @transform_1, window_bounds = array<i64: 128, 32>}, {transform_indices = @transform_2, window_bounds = array<i64: 4, 128>}, {pipeline_mode = #tpu.pipeline_mode<synchronous>, transform_indices = @transform_3, window_bounds = array<i64: 4, 32>}, {pipeline_mode = #tpu.pipeline_mode<synchronous>, transform_indices = @transform_4, window_bounds = array<i64: 4, 32>}, {pipeline_mode = #tpu.pipeline_mode<synchronous>, transform_indices = @transform_5, window_bounds = array<i64: 32, 32>}, {pipeline_mode = #tpu.pipeline_mode<synchronous>, transform_indices = @transform_6, window_bounds = array<i64: 1, 32>}, {pipeline_mode = #tpu.pipeline_mode<synchronous>, transform_indices = @transform_7, window_bounds = array<i64: 32, 32>}, {pipeline_mode = #tpu.pipeline_mode<synchronous>, transform_indices = @transform_8, window_bounds = array<i64: 1, 32>}, {pipeline_mode = #tpu.pipeline_mode<synchronous>, transform_indices = @transform_9, window_bounds = array<i64: 32, 32>}, {pipeline_mode = #tpu.pipeline_mode<synchronous>, transform_indices = @transform_10, window_bounds = array<i64: 1, 32>}, {pipeline_mode = #tpu.pipeline_mode<synchronous>, transform_indices = @transform_11, window_bounds = array<i64: 32, 4>}, {pipeline_mode = #tpu.pipeline_mode<synchronous>, transform_indices = @transform_12, window_bounds = array<i64: 32, 4>}, {pipeline_mode = #tpu.pipeline_mode<synchronous>, transform_indices = @transform_13, window_bounds = array<i64: 32, 4>}, {pipeline_mode = #tpu.pipeline_mode<synchronous>, transform_indices = @transform_14, window_bounds = array<i64: 4, 32>}]} {
    %c0_i32 = arith.constant 0 : i32
    %0 = arith.cmpi eq, %arg0, %c0_i32 : i32
    %1 = arith.extui %0 : i1 to i32
    %c0_i32_0 = arith.constant 0 : i32
    %2 = arith.cmpi ne, %1, %c0_i32_0 : i32
    scf.if %2 {
      %c0_50 = arith.constant 0 : index
      %c0_51 = arith.constant 0 : index
      %73 = vector.load %arg4[%c0_50, %c0_51] : memref<4x32xf32, #tpu.memory_space<vmem>>, vector<4x32xf32>
      %c0_52 = arith.constant 0 : index
      %c0_53 = arith.constant 0 : index
      %74 = vector.load %arg8[%c0_52, %c0_53] : memref<32x32xf32, #tpu.memory_space<vmem>>, vector<32x32xf32>
      %cst_54 = arith.constant dense<0.000000e+00> : vector<4x32xf32>
      %75 = tpu.matmul %73, %74, %cst_54 {dimension_numbers = #tpu.dot_dimension_numbers<[1], [0], [0], [1], [0, 0, 1, 1], [], []>} : vector<4x32xf32>, vector<32x32xf32>, vector<4x32xf32> -> vector<4x32xf32>
      %c0_55 = arith.constant 0 : index
      %c0_56 = arith.constant 0 : index
      %76 = vector.load %arg9[%c0_55, %c0_56] : memref<1x32xf32, #tpu.memory_space<vmem>>, vector<1x32xf32>
      %77 = vector.broadcast %76 : vector<1x32xf32> to vector<4x32xf32>
      %78 = arith.addf %75, %77 : vector<4x32xf32>
      %c0_57 = arith.constant 0 : index
      %c0_58 = arith.constant 0 : index
      %79 = vector.load %arg5[%c0_57, %c0_58] : memref<4x32xf32, #tpu.memory_space<vmem>>, vector<4x32xf32>
      %80 = tpu.concatenate %78, %79 in 1 : vector<4x32xf32>, vector<4x32xf32> -> vector<4x64xf32>
      %c0_59 = arith.constant 0 : index
      %c0_60 = arith.constant 0 : index
      %81 = vector.load %arg16[%c0_59, %c0_60] : memref<4x64xf32, #tpu.memory_space<vmem>>, vector<4x64xf32>
      tpu.vector_store %arg16[%c0_59, %c0_60], %80 {strides = array<i32>} : memref<4x64xf32, #tpu.memory_space<vmem>>, vector<4x64xf32>,
      %cst_61 = arith.constant -1.000000e+30 : f32
      %82 = vector.broadcast %cst_61 : f32 to vector<4x4xf32>
      %c0_62 = arith.constant 0 : index
      %c0_63 = arith.constant 0 : index
      %83 = vector.load %arg17[%c0_62, %c0_63] : memref<4x4xf32, #tpu.memory_space<vmem>>, vector<4x4xf32>
      tpu.vector_store %arg17[%c0_62, %c0_63], %82 {strides = array<i32>} : memref<4x4xf32, #tpu.memory_space<vmem>>, vector<4x4xf32>,
      %cst_64 = arith.constant 0.000000e+00 : f32
      %84 = vector.broadcast %cst_64 : f32 to vector<4x4xf32>
      %c0_65 = arith.constant 0 : index
      %c0_66 = arith.constant 0 : index
      %85 = vector.load %arg18[%c0_65, %c0_66] : memref<4x4xf32, #tpu.memory_space<vmem>>, vector<4x4xf32>
      tpu.vector_store %arg18[%c0_65, %c0_66], %84 {strides = array<i32>} : memref<4x4xf32, #tpu.memory_space<vmem>>, vector<4x4xf32>,
      %cst_67 = arith.constant 0.000000e+00 : f32
      %86 = vector.broadcast %cst_67 : f32 to vector<4x32xf32>
      %c0_68 = arith.constant 0 : index
      %c0_69 = arith.constant 0 : index
      %87 = vector.load %arg19[%c0_68, %c0_69] : memref<4x32xf32, #tpu.memory_space<vmem>>, vector<4x32xf32>
      tpu.vector_store %arg19[%c0_68, %c0_69], %86 {strides = array<i32>} : memref<4x32xf32, #tpu.memory_space<vmem>>, vector<4x32xf32>,
    } else {
    }
    %c0 = arith.constant 0 : index
    %c0_1 = arith.constant 0 : index
    %3 = vector.load %arg3[%c0, %c0_1] : memref<4x128xf32, #tpu.memory_space<vmem>>, vector<4x128xf32>
    %cst = arith.constant 0.000000e+00 : f32
    %4 = vector.broadcast %cst : f32 to vector<4x128xf32>
    %5 = arith.cmpf ogt, %3, %4 : vector<4x128xf32>
    %cst_2 = arith.constant 0.000000e+00 : f32
    %cst_3 = arith.constant -1.000000e+30 : f32
    %6 = vector.broadcast %cst_2 : f32 to vector<4x128xf32>
    %7 = vector.broadcast %cst_3 : f32 to vector<4x128xf32>
    %8 = arith.select %5, %6, %7 : vector<4x128xi1>, vector<4x128xf32>
    %cst_4 = arith.constant dense<0xFF800000> : vector<128xf32>
    %9 = vector.multi_reduction <maximumf>, %8, %cst_4 [0] : vector<4x128xf32> to vector<128xf32>
    %10 = vector.shape_cast %9 : vector<128xf32> to vector<1x128xf32>
    %c0_5 = arith.constant 0 : index
    %c0_6 = arith.constant 0 : index
    %11 = vector.load %arg1[%c0_5, %c0_6] : memref<128x32xf32, #tpu.memory_space<vmem>>, vector<128x32xf32>
    %c0_7 = arith.constant 0 : index
    %c0_8 = arith.constant 0 : index
    %12 = vector.load %arg6[%c0_7, %c0_8] : memref<32x32xf32, #tpu.memory_space<vmem>>, vector<32x32xf32>
    %cst_9 = arith.constant dense<0.000000e+00> : vector<128x32xf32>
    %13 = tpu.matmul %11, %12, %cst_9 {dimension_numbers = #tpu.dot_dimension_numbers<[1], [0], [0], [1], [0, 0, 1, 1], [], []>} : vector<128x32xf32>, vector<32x32xf32>, vector<128x32xf32> -> vector<128x32xf32>
    %c0_10 = arith.constant 0 : index
    %c0_11 = arith.constant 0 : index
    %14 = vector.load %arg7[%c0_10, %c0_11] : memref<1x32xf32, #tpu.memory_space<vmem>>, vector<1x32xf32>
    %15 = vector.broadcast %14 : vector<1x32xf32> to vector<128x32xf32>
    %16 = arith.addf %13, %15 : vector<128x32xf32>
    %c0_12 = arith.constant 0 : index
    %c0_13 = arith.constant 0 : index
    %17 = vector.load %arg16[%c0_12, %c0_13] : memref<4x64xf32, #tpu.memory_space<vmem>>, vector<4x64xf32>
    %cst_14 = arith.constant dense<0.000000e+00> : vector<128x64xf32>
    %18 = tpu.matmul %3, %17, %cst_14 {dimension_numbers = #tpu.dot_dimension_numbers<[0], [0], [1], [1], [0, 1, 1, 1], [], []>} : vector<4x128xf32>, vector<4x64xf32>, vector<128x64xf32> -> vector<128x64xf32>
    %19 = vector.extract_strided_slice %18 {offsets = [0, 0], sizes = [128, 32], strides = [1, 1]} : vector<128x64xf32> to vector<128x32xf32>
    %20 = vector.extract_strided_slice %18 {offsets = [0, 32], sizes = [128, 32], strides = [1, 1]} : vector<128x64xf32> to vector<128x32xf32>
    %21 = arith.addf %16, %19 : vector<128x32xf32>
    %cst_15 = arith.constant 0.000000e+00 : f32
    %22 = vector.broadcast %cst_15 : f32 to vector<128x32xf32>
    %23 = arith.cmpf ogt, %21, %22 : vector<128x32xf32>
    %cst_16 = arith.constant 0.00999999977 : f32
    %24 = vector.broadcast %cst_16 : f32 to vector<128x32xf32>
    %25 = arith.mulf %24, %21 : vector<128x32xf32>
    %26 = arith.select %23, %21, %25 : vector<128x32xi1>, vector<128x32xf32>
    %c0_17 = arith.constant 0 : index
    %c0_18 = arith.constant 0 : index
    %27 = vector.load %arg2[%c0_17, %c0_18] : memref<128x32xf32, #tpu.memory_space<vmem>>, vector<128x32xf32>
    %28 = arith.addf %27, %20 : vector<128x32xf32>
    %cst_19 = arith.constant 0.000000e+00 : f32
    %29 = vector.broadcast %cst_19 : f32 to vector<128x32xf32>
    %30 = arith.cmpf ogt, %28, %29 : vector<128x32xf32>
    %cst_20 = arith.constant 0.00999999977 : f32
    %31 = vector.broadcast %cst_20 : f32 to vector<128x32xf32>
    %32 = arith.mulf %31, %28 : vector<128x32xf32>
    %33 = arith.select %30, %28, %32 : vector<128x32xi1>, vector<128x32xf32>
    %c0_21 = arith.constant 0 : index
    %c0_22 = arith.constant 0 : index
    %34 = vector.load %arg12[%c0_21, %c0_22] : memref<32x4xf32, #tpu.memory_space<vmem>>, vector<32x4xf32>
    %cst_23 = arith.constant dense<0.000000e+00> : vector<4x128xf32>
    %35 = tpu.matmul %34, %26, %cst_23 {dimension_numbers = #tpu.dot_dimension_numbers<[0], [1], [1], [0], [0, 1, 1, 0], [], []>} : vector<32x4xf32>, vector<128x32xf32>, vector<4x128xf32> -> vector<4x128xf32>
    %c0_24 = arith.constant 0 : index
    %c0_25 = arith.constant 0 : index
    %36 = vector.load %arg13[%c0_24, %c0_25] : memref<32x4xf32, #tpu.memory_space<vmem>>, vector<32x4xf32>
    %cst_26 = arith.constant dense<0.000000e+00> : vector<4x128xf32>
    %37 = tpu.matmul %36, %33, %cst_26 {dimension_numbers = #tpu.dot_dimension_numbers<[0], [1], [1], [0], [0, 1, 1, 0], [], []>} : vector<32x4xf32>, vector<128x32xf32>, vector<4x128xf32> -> vector<4x128xf32>
    %38 = arith.addf %35, %37 : vector<4x128xf32>
    %39 = vector.broadcast %10 : vector<1x128xf32> to vector<4x128xf32>
    %40 = arith.addf %38, %39 : vector<4x128xf32>
    %c0_27 = arith.constant 0 : index
    %c0_28 = arith.constant 0 : index
    %41 = vector.load %arg17[%c0_27, %c0_28] : memref<4x4xf32, #tpu.memory_space<vmem>>, vector<4x4xf32>
    %42 = vector.shape_cast %40 : vector<4x128xf32> to vector<1x4x128xf32>
    %43 = vector.shape_cast %8 : vector<4x128xf32> to vector<4x1x128xf32>
    %44 = vector.broadcast %42 : vector<1x4x128xf32> to vector<4x4x128xf32>
    %45 = vector.broadcast %43 : vector<4x1x128xf32> to vector<4x4x128xf32>
    %46 = arith.addf %44, %45 : vector<4x4x128xf32>
    %cst_29 = arith.constant dense<0xFF800000> : vector<4x4xf32>
    %47 = vector.multi_reduction <maximumf>, %46, %cst_29 [2] : vector<4x4x128xf32> to vector<4x4xf32>
    %48 = arith.maximumf %41, %47 : vector<4x4xf32>
    %49 = arith.subf %41, %48 : vector<4x4xf32>
    %50 = math.exp %49 : vector<4x4xf32>
    %cst_30 = arith.constant dense<0.000000e+00> : vector<4x128xf32>
    %51 = tpu.matmul %48, %3, %cst_30 {dimension_numbers = #tpu.dot_dimension_numbers<[0], [0], [1], [1], [0, 1, 1, 1], [], []>} : vector<4x4xf32>, vector<4x128xf32>, vector<4x128xf32> -> vector<4x128xf32>
    %52 = arith.subf %40, %51 : vector<4x128xf32>
    %53 = math.exp %52 : vector<4x128xf32>
    %cst_31 = arith.constant dense<0.000000e+00> : vector<4x4xf32>
    %54 = tpu.matmul %3, %53, %cst_31 {dimension_numbers = #tpu.dot_dimension_numbers<[1], [1], [0], [0], [0, 0, 1, 0], [], []>} : vector<4x128xf32>, vector<4x128xf32>, vector<4x4xf32> -> vector<4x4xf32>
    %c0_32 = arith.constant 0 : index
    %c0_33 = arith.constant 0 : index
    %55 = vector.load %arg18[%c0_32, %c0_33] : memref<4x4xf32, #tpu.memory_space<vmem>>, vector<4x4xf32>
    %56 = arith.mulf %50, %55 : vector<4x4xf32>
    %57 = arith.addf %56, %54 : vector<4x4xf32>
    %c0_34 = arith.constant 0 : index
    %c0_35 = arith.constant 0 : index
    %58 = vector.load %arg18[%c0_34, %c0_35] : memref<4x4xf32, #tpu.memory_space<vmem>>, vector<4x4xf32>
    tpu.vector_store %arg18[%c0_34, %c0_35], %57 {strides = array<i32>} : memref<4x4xf32, #tpu.memory_space<vmem>>, vector<4x4xf32>,
    %c0_36 = arith.constant 0 : index
    %c0_37 = arith.constant 0 : index
    %59 = vector.load %arg14[%c0_36, %c0_37] : memref<32x4xf32, #tpu.memory_space<vmem>>, vector<32x4xf32>
    %cst_38 = arith.constant dense<0.000000e+00> : vector<128x32xf32>
    %60 = tpu.matmul %53, %59, %cst_38 {dimension_numbers = #tpu.dot_dimension_numbers<[0], [1], [1], [0], [0, 1, 1, 0], [], []>} : vector<4x128xf32>, vector<32x4xf32>, vector<128x32xf32> -> vector<128x32xf32>
    %61 = arith.mulf %16, %60 : vector<128x32xf32>
    %cst_39 = arith.constant dense<0.000000e+00> : vector<4x32xf32>
    %62 = tpu.matmul %3, %61, %cst_39 {dimension_numbers = #tpu.dot_dimension_numbers<[1], [0], [0], [1], [0, 0, 1, 1], [], []>} : vector<4x128xf32>, vector<128x32xf32>, vector<4x32xf32> -> vector<4x32xf32>
    %c0_40 = arith.constant 0 : index
    %c0_41 = arith.constant 0 : index
    %63 = vector.load %arg14[%c0_40, %c0_41] : memref<32x4xf32, #tpu.memory_space<vmem>>, vector<32x4xf32>
    %cst_42 = arith.constant dense<0.000000e+00> : vector<4x32xf32>
    %64 = tpu.matmul %50, %63, %cst_42 {dimension_numbers = #tpu.dot_dimension_numbers<[1], [1], [0], [0], [0, 0, 1, 0], [], []>} : vector<4x4xf32>, vector<32x4xf32>, vector<4x32xf32> -> vector<4x32xf32>
    %c0_43 = arith.constant 0 : index
    %c0_44 = arith.constant 0 : index
    %65 = vector.load %arg19[%c0_43, %c0_44] : memref<4x32xf32, #tpu.memory_space<vmem>>, vector<4x32xf32>
    %66 = arith.mulf %64, %65 : vector<4x32xf32>
    %67 = arith.addf %66, %62 : vector<4x32xf32>
    %c0_45 = arith.constant 0 : index
    %c0_46 = arith.constant 0 : index
    %68 = vector.load %arg19[%c0_45, %c0_46] : memref<4x32xf32, #tpu.memory_space<vmem>>, vector<4x32xf32>
    tpu.vector_store %arg19[%c0_45, %c0_46], %67 {strides = array<i32>} : memref<4x32xf32, #tpu.memory_space<vmem>>, vector<4x32xf32>,
    %c0_47 = arith.constant 0 : index
    %c0_48 = arith.constant 0 : index
    %69 = vector.load %arg17[%c0_47, %c0_48] : memref<4x4xf32, #tpu.memory_space<vmem>>, vector<4x4xf32>
    tpu.vector_store %arg17[%c0_47, %c0_48], %48 {strides = array<i32>} : memref<4x4xf32, #tpu.memory_space<vmem>>, vector<4x4xf32>,
    %c1_i32 = arith.constant 1 : i32
    %70 = arith.cmpi eq, %arg0, %c1_i32 : i32
    %71 = arith.extui %70 : i1 to i32
    %c0_i32_49 = arith.constant 0 : i32
    %72 = arith.cmpi ne, %71, %c0_i32_49 : i32
    scf.if %72 {
      %c0_50 = arith.constant 0 : index
      %c0_51 = arith.constant 0 : index
      %73 = vector.load %arg18[%c0_50, %c0_51] : memref<4x4xf32, #tpu.memory_space<vmem>>, vector<4x4xf32>
      %cst_52 = arith.constant 0.000000e+00 : f32
      %74 = vector.broadcast %cst_52 : f32 to vector<4x4xf32>
      %75 = arith.cmpf ogt, %73, %74 : vector<4x4xf32>
      %76 = tpu.reciprocal %73 : vector<4x4xf32> -> vector<4x4xf32>
      %cst_53 = arith.constant 0.000000e+00 : f32
      %77 = vector.broadcast %cst_53 : f32 to vector<4x4xf32>
      %78 = arith.select %75, %76, %77 : vector<4x4xi1>, vector<4x4xf32>
      %c0_54 = arith.constant 0 : index
      %c0_55 = arith.constant 0 : index
      %79 = vector.load %arg14[%c0_54, %c0_55] : memref<32x4xf32, #tpu.memory_space<vmem>>, vector<32x4xf32>
      %cst_56 = arith.constant dense<0.000000e+00> : vector<4x32xf32>
      %80 = tpu.matmul %78, %79, %cst_56 {dimension_numbers = #tpu.dot_dimension_numbers<[1], [1], [0], [0], [0, 0, 1, 0], [], []>} : vector<4x4xf32>, vector<32x4xf32>, vector<4x32xf32> -> vector<4x32xf32>
      %c0_57 = arith.constant 0 : index
      %c0_58 = arith.constant 0 : index
      %81 = vector.load %arg19[%c0_57, %c0_58] : memref<4x32xf32, #tpu.memory_space<vmem>>, vector<4x32xf32>
      %82 = arith.mulf %81, %80 : vector<4x32xf32>
      %c0_59 = arith.constant 0 : index
      %c0_60 = arith.constant 0 : index
      %83 = vector.load %arg10[%c0_59, %c0_60] : memref<32x32xf32, #tpu.memory_space<vmem>>, vector<32x32xf32>
      %cst_61 = arith.constant dense<0.000000e+00> : vector<4x32xf32>
      %84 = tpu.matmul %82, %83, %cst_61 {dimension_numbers = #tpu.dot_dimension_numbers<[1], [0], [0], [1], [0, 0, 1, 1], [], []>} : vector<4x32xf32>, vector<32x32xf32>, vector<4x32xf32> -> vector<4x32xf32>
      %c0_62 = arith.constant 0 : index
      %c0_63 = arith.constant 0 : index
      %85 = vector.load %arg11[%c0_62, %c0_63] : memref<1x32xf32, #tpu.memory_space<vmem>>, vector<1x32xf32>
      %86 = vector.broadcast %85 : vector<1x32xf32> to vector<4x32xf32>
      %87 = arith.addf %84, %86 : vector<4x32xf32>
      %c0_64 = arith.constant 0 : index
      %c0_65 = arith.constant 0 : index
      %88 = vector.load %arg15[%c0_64, %c0_65] : memref<4x32xf32, #tpu.memory_space<vmem>>, vector<4x32xf32>
      tpu.vector_store %arg15[%c0_64, %c0_65], %87 {strides = array<i32>} : memref<4x32xf32, #tpu.memory_space<vmem>>, vector<4x32xf32>,
    } else {
    }
    return
  }
  func.func @transform_0(%arg0: i32) -> (i32, i32) {
    %c0_i32 = arith.constant 0 : i32
    %c0_i32_0 = arith.constant 0 : i32
    return %arg0, %c0_i32 : i32, i32
  }
  func.func @transform_1(%arg0: i32) -> (i32, i32) {
    %c0_i32 = arith.constant 0 : i32
    %c0_i32_0 = arith.constant 0 : i32
    return %arg0, %c0_i32 : i32, i32
  }
  func.func @transform_2(%arg0: i32) -> (i32, i32) {
    %c0_i32 = arith.constant 0 : i32
    %c0_i32_0 = arith.constant 0 : i32
    return %c0_i32, %arg0 : i32, i32
  }
  func.func @transform_3(%arg0: i32) -> (i32, i32) {
    %c0_i32 = arith.constant 0 : i32
    %c0_i32_0 = arith.constant 0 : i32
    %c0_i32_1 = arith.constant 0 : i32
    return %c0_i32, %c0_i32_0 : i32, i32
  }
  func.func @transform_4(%arg0: i32) -> (i32, i32) {
    %c0_i32 = arith.constant 0 : i32
    %c0_i32_0 = arith.constant 0 : i32
    %c0_i32_1 = arith.constant 0 : i32
    return %c0_i32, %c0_i32_0 : i32, i32
  }
  func.func @transform_5(%arg0: i32) -> (i32, i32) {
    %c0_i32 = arith.constant 0 : i32
    %c0_i32_0 = arith.constant 0 : i32
    %c0_i32_1 = arith.constant 0 : i32
    return %c0_i32, %c0_i32_0 : i32, i32
  }
  func.func @transform_6(%arg0: i32) -> (i32, i32) {
    %c0_i32 = arith.constant 0 : i32
    %c0_i32_0 = arith.constant 0 : i32
    %c0_i32_1 = arith.constant 0 : i32
    return %c0_i32, %c0_i32_0 : i32, i32
  }
  func.func @transform_7(%arg0: i32) -> (i32, i32) {
    %c0_i32 = arith.constant 0 : i32
    %c0_i32_0 = arith.constant 0 : i32
    %c0_i32_1 = arith.constant 0 : i32
    return %c0_i32, %c0_i32_0 : i32, i32
  }
  func.func @transform_8(%arg0: i32) -> (i32, i32) {
    %c0_i32 = arith.constant 0 : i32
    %c0_i32_0 = arith.constant 0 : i32
    %c0_i32_1 = arith.constant 0 : i32
    return %c0_i32, %c0_i32_0 : i32, i32
  }
  func.func @transform_9(%arg0: i32) -> (i32, i32) {
    %c0_i32 = arith.constant 0 : i32
    %c0_i32_0 = arith.constant 0 : i32
    %c0_i32_1 = arith.constant 0 : i32
    return %c0_i32, %c0_i32_0 : i32, i32
  }
  func.func @transform_10(%arg0: i32) -> (i32, i32) {
    %c0_i32 = arith.constant 0 : i32
    %c0_i32_0 = arith.constant 0 : i32
    %c0_i32_1 = arith.constant 0 : i32
    return %c0_i32, %c0_i32_0 : i32, i32
  }
  func.func @transform_11(%arg0: i32) -> (i32, i32) {
    %c0_i32 = arith.constant 0 : i32
    %c0_i32_0 = arith.constant 0 : i32
    %c0_i32_1 = arith.constant 0 : i32
    return %c0_i32, %c0_i32_0 : i32, i32
  }
  func.func @transform_12(%arg0: i32) -> (i32, i32) {
    %c0_i32 = arith.constant 0 : i32
    %c0_i32_0 = arith.constant 0 : i32
    %c0_i32_1 = arith.constant 0 : i32
    return %c0_i32, %c0_i32_0 : i32, i32
  }
  func.func @transform_13(%arg0: i32) -> (i32, i32) {
    %c0_i32 = arith.constant 0 : i32
    %c0_i32_0 = arith.constant 0 : i32
    %c0_i32_1 = arith.constant 0 : i32
    return %c0_i32, %c0_i32_0 : i32, i32
  }
  func.func @transform_14(%arg0: i32) -> (i32, i32) {
    %c0_i32 = arith.constant 0 : i32
    %c0_i32_0 = arith.constant 0 : i32
    %c0_i32_1 = arith.constant 0 : i32
    return %c0_i32, %c0_i32_0 : i32, i32
  }
}

</mosaic_0001>

<llo_original>
// kernel: tpu_custom_call.1
$region0: #{tpu_custom_call.1}
  #allocation0 [shape = 'u32[]', space=smem, size = 0x4, offset = 0x4, fixed_abs, tag = 'smem constant byte address 0x4 - core index']
  #allocation1 [shape = 'u32[144,128]{1,0:T(1,128)}', space=vmem, size = 0x12000, scoped, tag = 'internal scratch']
  #allocation2 [shape = 'f32[4,64]{1,0:T(4,128)}', space=vmem, size = 0x800, scoped, tag = 'scratch operand']
  #allocation3 [shape = 'f32[4,4]{1,0:T(4,128)}', space=vmem, size = 0x800, scoped, tag = 'scratch operand']
  #allocation4 [shape = 'f32[4,4]{1,0:T(4,128)}', space=vmem, size = 0x800, scoped, tag = 'scratch operand']
  #allocation5 [shape = 'f32[4,32]{1,0:T(4,128)}', space=vmem, size = 0x800, scoped, tag = 'scratch operand']
  %s0 = inlined_call_operand.vmem [shape: f32[256,32], index: 0, kind: input, shape index: {}]
  %s1 = inlined_call_operand.vmem [shape: f32[256,32], index: 1, kind: input, shape index: {}]
  %s2 = inlined_call_operand.vmem [shape: f32[4,256], index: 2, kind: input, shape index: {}]
  %s3 = inlined_call_operand.vmem [shape: f32[4,32], index: 3, kind: input, shape index: {}]
  %s4 = inlined_call_operand.vmem [shape: f32[4,32], index: 4, kind: input, shape index: {}]
  %s5 = inlined_call_operand.vmem [shape: f32[32,32], index: 5, kind: input, shape index: {}]
  %s6 = inlined_call_operand.vmem [shape: f32[1,32], index: 6, kind: input, shape index: {}]
  %s7 = inlined_call_operand.vmem [shape: f32[32,32], index: 7, kind: input, shape index: {}]
  %s8 = inlined_call_operand.vmem [shape: f32[1,32], index: 8, kind: input, shape index: {}]
  %s9 = inlined_call_operand.vmem [shape: f32[32,32], index: 9, kind: input, shape index: {}]
  %s10 = inlined_call_operand.vmem [shape: f32[1,32], index: 10, kind: input, shape index: {}]
  %s11 = inlined_call_operand.vmem [shape: f32[32,4], index: 11, kind: input, shape index: {}]
  %s12 = inlined_call_operand.vmem [shape: f32[32,4], index: 12, kind: input, shape index: {}]
  %s13 = inlined_call_operand.vmem [shape: f32[32,4], index: 13, kind: input, shape index: {}]
  %s14 = inlined_call_operand.hbm [shape: f32[4,32], index: 14, kind: output, shape index: {}]
  %s15 = sld [smem:[#allocation0]]
  $region97: #{tpu_custom_call.1} parent=0
    _
  %s17 = ssub.s32 1, %s15
  %s18 = scalar_select 0, %s17, %s15
  $region1: #{tpu_custom_call.1} parent=0
    #allocation6 [shape = 'u8[2048]{0}', space=vmem, size = 0x800, scoped, tag = 'output window, operand 0, single buffered']
    #allocation7 [shape = 's32[2]{0}', space=sflag, size = 0x8, scoped, tag = 'scoped memory for tpu_custom_call.1']
    %19 = vsyncpa [#allocation7], 0
    loop: start=0, step=1, limit=4
    $region2: #{tpu_custom_call.1} parent=1 // loop_pre_header
      _
    $region3: #{tpu_custom_call.1} parent=1 // loop_header
      %s21 = sphi 0, %s25
      %p22 = scmp.ge.s32.totalorder %s21, 4
      %s31 = sphi 0, %s33
      %s34 = sphi 0, %s31
      %s35 = sphi 0, %s34
      %s51 = sphi 0, %s35
      %s57 = sphi 0, %s59
      %s60 = sphi 0, %s57
      %s61 = sphi 0, %s60
      %s77 = sphi 0, %s61
      %s83 = sphi 0, %s85
      %s86 = sphi 0, %s83
      %s87 = sphi 0, %s86
      %s103 = sphi 0, %s87
      %s107 = sphi 0, %s107
      %s109 = sphi 0, %s107
      %s110 = sphi 0, %s109
      %s124 = sphi 0, %s110
      %s128 = sphi 0, %s128
      %s130 = sphi 0, %s128
      %s131 = sphi 0, %s130
      %s145 = sphi 0, %s131
      %s149 = sphi 0, %s149
      %s151 = sphi 0, %s149
      %s152 = sphi 0, %s151
      %s166 = sphi 0, %s152
      %s170 = sphi 0, %s170
      %s172 = sphi 0, %s170
      %s173 = sphi 0, %s172
      %s187 = sphi 0, %s173
      %s191 = sphi 0, %s191
      %s193 = sphi 0, %s191
      %s194 = sphi 0, %s193
      %s208 = sphi 0, %s194
      %s212 = sphi 0, %s212
      %s214 = sphi 0, %s212
      %s215 = sphi 0, %s214
      %s229 = sphi 0, %s215
      %s233 = sphi 0, %s233
      %s235 = sphi 0, %s233
      %s236 = sphi 0, %s235
      %s250 = sphi 0, %s236
      %s254 = sphi 0, %s254
      %s256 = sphi 0, %s254
      %s257 = sphi 0, %s256
      %s271 = sphi 0, %s257
      %s275 = sphi 0, %s275
      %s277 = sphi 0, %s275
      %s278 = sphi 0, %s277
      %s292 = sphi 0, %s278
      %s296 = sphi 0, %s296
      %s298 = sphi 0, %s296
      %s299 = sphi 0, %s298
      %s313 = sphi 0, %s299
      %s317 = sphi 0, %s317
      %s319 = sphi 0, %s317
      %s320 = sphi 0, %s319
      %s334 = sphi 0, %s320
      %s338 = sphi 0, %s338
      %s340 = sphi 0, %s338
      %s341 = sphi 0, %s340
      %s355 = sphi 0, %s341
    $region4: #{tpu_custom_call.1} parent=1 // loop_header_branch
      %24 = sbr.rel (%p22) target = $region8
    $region5: #{tpu_custom_call.1} parent=1 // loop_body
      %s26 = ssub.s32 %s21, 1
      %s27 = ssub.s32 %s21, 2
      %s28 = sadd.s32 %s21, 1
      %s29 = ssub.s32 %s21, %s28
      %p30 = scmp.eq.s32.totalorder %s29, 0
      %s32 = sadd.s32 %s31, 1
      %s33 = scalar_select %p30, %s31, %s32
      %p36 = pneg %p30
      %p37 = scmp.eq.s32.totalorder %s21, 1
      %p38 = por %p36, %p37
      %p39 = scmp.ne.s32.totalorder %s31, %s34
      %p40 = scmp.eq.s32.totalorder %s21, 0
      %p41 = por %p39, %p40
      %p42 = scmp.ne.s32.totalorder %s31, %s34
      %p43 = scmp.eq.s32.totalorder %s26, 1
      %p44 = por %p42, %p43
      %p45 = scmp.ne.s32.totalorder %s34, %s35
      %p46 = scmp.eq.s32.totalorder %s26, 0
      %p47 = por %p45, %p46
      %p48 = scmp.ne.s32.totalorder %s34, %s35
      %p49 = scmp.eq.s32.totalorder %s27, 1
      %p50 = por %p48, %p49
      %p52 = scmp.ne.s32.totalorder %s35, %s51
      %p53 = scmp.eq.s32.totalorder %s27, 0
      %p54 = por %p52, %p53
      %s55 = ssub.s32 %s21, %s28
      %p56 = scmp.eq.s32.totalorder %s55, 0
      %s58 = sadd.s32 %s57, 1
      %s59 = scalar_select %p56, %s57, %s58
      %p62 = pneg %p56
      %p63 = scmp.eq.s32.totalorder %s21, 1
      %p64 = por %p62, %p63
      %p65 = scmp.ne.s32.totalorder %s57, %s60
      %p66 = scmp.eq.s32.totalorder %s21, 0
      %p67 = por %p65, %p66
      %p68 = scmp.ne.s32.totalorder %s57, %s60
      %p69 = scmp.eq.s32.totalorder %s26, 1
      %p70 = por %p68, %p69
      %p71 = scmp.ne.s32.totalorder %s60, %s61
      %p72 = scmp.eq.s32.totalorder %s26, 0
      %p73 = por %p71, %p72
      %p74 = scmp.ne.s32.totalorder %s60, %s61
      %p75 = scmp.eq.s32.totalorder %s27, 1
      %p76 = por %p74, %p75
      %p78 = scmp.ne.s32.totalorder %s61, %s77
      %p79 = scmp.eq.s32.totalorder %s27, 0
      %p80 = por %p78, %p79
      %s81 = ssub.s32 %s21, %s28
      %p82 = scmp.eq.s32.totalorder %s81, 0
      %s84 = sadd.s32 %s83, 1
      %s85 = scalar_select %p82, %s83, %s84
      %p88 = pneg %p82
      %p89 = scmp.eq.s32.totalorder %s21, 1
      %p90 = por %p88, %p89
      %p91 = scmp.ne.s32.totalorder %s83, %s86
      %p92 = scmp.eq.s32.totalorder %s21, 0
      %p93 = por %p91, %p92
      %p94 = scmp.ne.s32.totalorder %s83, %s86
      %p95 = scmp.eq.s32.totalorder %s26, 1
      %p96 = por %p94, %p95
      %p97 = scmp.ne.s32.totalorder %s86, %s87
      %p98 = scmp.eq.s32.totalorder %s26, 0
      %p99 = por %p97, %p98
      %p100 = scmp.ne.s32.totalorder %s86, %s87
      %p101 = scmp.eq.s32.totalorder %s27, 1
      %p102 = por %p100, %p101
      %p104 = scmp.ne.s32.totalorder %s87, %s103
      %p105 = scmp.eq.s32.totalorder %s27, 0
      %p106 = por %p104, %p105
      %s108 = sadd.s32 %s107, 1
      %p111 = scmp.eq.s32.totalorder %s21, 1
      %p112 = scmp.ne.s32.totalorder %s107, %s109
      %p113 = scmp.eq.s32.totalorder %s21, 0
      %p114 = por %p112, %p113
      %p115 = scmp.ne.s32.totalorder %s107, %s109
      %p116 = scmp.eq.s32.totalorder %s26, 1
      %p117 = por %p115, %p116
      %p118 = scmp.ne.s32.totalorder %s109, %s110
      %p119 = scmp.eq.s32.totalorder %s26, 0
      %p120 = por %p118, %p119
      %p121 = scmp.ne.s32.totalorder %s109, %s110
      %p122 = scmp.eq.s32.totalorder %s27, 1
      %p123 = por %p121, %p122
      %p125 = scmp.ne.s32.totalorder %s110, %s124
      %p126 = scmp.eq.s32.totalorder %s27, 0
      %p127 = por %p125, %p126
      %s129 = sadd.s32 %s128, 1
      %p132 = scmp.eq.s32.totalorder %s21, 1
      %p133 = scmp.ne.s32.totalorder %s128, %s130
      %p134 = scmp.eq.s32.totalorder %s21, 0
      %p135 = por %p133, %p134
      %p136 = scmp.ne.s32.totalorder %s128, %s130
      %p137 = scmp.eq.s32.totalorder %s26, 1
      %p138 = por %p136, %p137
      %p139 = scmp.ne.s32.totalorder %s130, %s131
      %p140 = scmp.eq.s32.totalorder %s26, 0
      %p141 = por %p139, %p140
      %p142 = scmp.ne.s32.totalorder %s130, %s131
      %p143 = scmp.eq.s32.totalorder %s27, 1
      %p144 = por %p142, %p143
      %p146 = scmp.ne.s32.totalorder %s131, %s145
      %p147 = scmp.eq.s32.totalorder %s27, 0
      %p148 = por %p146, %p147
      %s150 = sadd.s32 %s149, 1
      %p153 = scmp.eq.s32.totalorder %s21, 1
      %p154 = scmp.ne.s32.totalorder %s149, %s151
      %p155 = scmp.eq.s32.totalorder %s21, 0
      %p156 = por %p154, %p155
      %p157 = scmp.ne.s32.totalorder %s149, %s151
      %p158 = scmp.eq.s32.totalorder %s26, 1
      %p159 = por %p157, %p158
      %p160 = scmp.ne.s32.totalorder %s151, %s152
      %p161 = scmp.eq.s32.totalorder %s26, 0
      %p162 = por %p160, %p161
      %p163 = scmp.ne.s32.totalorder %s151, %s152
      %p164 = scmp.eq.s32.totalorder %s27, 1
      %p165 = por %p163, %p164
      %p167 = scmp.ne.s32.totalorder %s152, %s166
      %p168 = scmp.eq.s32.totalorder %s27, 0
      %p169 = por %p167, %p168
      %s171 = sadd.s32 %s170, 1
      %p174 = scmp.eq.s32.totalorder %s21, 1
      %p175 = scmp.ne.s32.totalorder %s170, %s172
      %p176 = scmp.eq.s32.totalorder %s21, 0
      %p177 = por %p175, %p176
      %p178 = scmp.ne.s32.totalorder %s170, %s172
      %p179 = scmp.eq.s32.totalorder %s26, 1
      %p180 = por %p178, %p179
      %p181 = scmp.ne.s32.totalorder %s172, %s173
      %p182 = scmp.eq.s32.totalorder %s26, 0
      %p183 = por %p181, %p182
      %p184 = scmp.ne.s32.totalorder %s172, %s173
      %p185 = scmp.eq.s32.totalorder %s27, 1
      %p186 = por %p184, %p185
      %p188 = scmp.ne.s32.totalorder %s173, %s187
      %p189 = scmp.eq.s32.totalorder %s27, 0
      %p190 = por %p188, %p189
      %s192 = sadd.s32 %s191, 1
      %p195 = scmp.eq.s32.totalorder %s21, 1
      %p196 = scmp.ne.s32.totalorder %s191, %s193
      %p197 = scmp.eq.s32.totalorder %s21, 0
      %p198 = por %p196, %p197
      %p199 = scmp.ne.s32.totalorder %s191, %s193
      %p200 = scmp.eq.s32.totalorder %s26, 1
      %p201 = por %p199, %p200
      %p202 = scmp.ne.s32.totalorder %s193, %s194
      %p203 = scmp.eq.s32.totalorder %s26, 0
      %p204 = por %p202, %p203
      %p205 = scmp.ne.s32.totalorder %s193, %s194
      %p206 = scmp.eq.s32.totalorder %s27, 1
      %p207 = por %p205, %p206
      %p209 = scmp.ne.s32.totalorder %s194, %s208
      %p210 = scmp.eq.s32.totalorder %s27, 0
      %p211 = por %p209, %p210
      %s213 = sadd.s32 %s212, 1
      %p216 = scmp.eq.s32.totalorder %s21, 1
      %p217 = scmp.ne.s32.totalorder %s212, %s214
      %p218 = scmp.eq.s32.totalorder %s21, 0
      %p219 = por %p217, %p218
      %p220 = scmp.ne.s32.totalorder %s212, %s214
      %p221 = scmp.eq.s32.totalorder %s26, 1
      %p222 = por %p220, %p221
      %p223 = scmp.ne.s32.totalorder %s214, %s215
      %p224 = scmp.eq.s32.totalorder %s26, 0
      %p225 = por %p223, %p224
      %p226 = scmp.ne.s32.totalorder %s214, %s215
      %p227 = scmp.eq.s32.totalorder %s27, 1
      %p228 = por %p226, %p227
      %p230 = scmp.ne.s32.totalorder %s215, %s229
      %p231 = scmp.eq.s32.totalorder %s27, 0
      %p232 = por %p230, %p231
      %s234 = sadd.s32 %s233, 1
      %p237 = scmp.eq.s32.totalorder %s21, 1
      %p238 = scmp.ne.s32.totalorder %s233, %s235
      %p239 = scmp.eq.s32.totalorder %s21, 0
      %p240 = por %p238, %p239
      %p241 = scmp.ne.s32.totalorder %s233, %s235
      %p242 = scmp.eq.s32.totalorder %s26, 1
      %p243 = por %p241, %p242
      %p244 = scmp.ne.s32.totalorder %s235, %s236
      %p245 = scmp.eq.s32.totalorder %s26, 0
      %p246 = por %p244, %p245
      %p247 = scmp.ne.s32.totalorder %s235, %s236
      %p248 = scmp.eq.s32.totalorder %s27, 1
      %p249 = por %p247, %p248
      %p251 = scmp.ne.s32.totalorder %s236, %s250
      %p252 = scmp.eq.s32.totalorder %s27, 0
      %p253 = por %p251, %p252
      %s255 = sadd.s32 %s254, 1
      %p258 = scmp.eq.s32.totalorder %s21, 1
      %p259 = scmp.ne.s32.totalorder %s254, %s256
      %p260 = scmp.eq.s32.totalorder %s21, 0
      %p261 = por %p259, %p260
      %p262 = scmp.ne.s32.totalorder %s254, %s256
      %p263 = scmp.eq.s32.totalorder %s26, 1
      %p264 = por %p262, %p263
      %p265 = scmp.ne.s32.totalorder %s256, %s257
      %p266 = scmp.eq.s32.totalorder %s26, 0
      %p267 = por %p265, %p266
      %p268 = scmp.ne.s32.totalorder %s256, %s257
      %p269 = scmp.eq.s32.totalorder %s27, 1
      %p270 = por %p268, %p269
      %p272 = scmp.ne.s32.totalorder %s257, %s271
      %p273 = scmp.eq.s32.totalorder %s27, 0
      %p274 = por %p272, %p273
      %s276 = sadd.s32 %s275, 1
      %p279 = scmp.eq.s32.totalorder %s21, 1
      %p280 = scmp.ne.s32.totalorder %s275, %s277
      %p281 = scmp.eq.s32.totalorder %s21, 0
      %p282 = por %p280, %p281
      %p283 = scmp.ne.s32.totalorder %s275, %s277
      %p284 = scmp.eq.s32.totalorder %s26, 1
      %p285 = por %p283, %p284
      %p286 = scmp.ne.s32.totalorder %s277, %s278
      %p287 = scmp.eq.s32.totalorder %s26, 0
      %p288 = por %p286, %p287
      %p289 = scmp.ne.s32.totalorder %s277, %s278
      %p290 = scmp.eq.s32.totalorder %s27, 1
      %p291 = por %p289, %p290
      %p293 = scmp.ne.s32.totalorder %s278, %s292
      %p294 = scmp.eq.s32.totalorder %s27, 0
      %p295 = por %p293, %p294
      %s297 = sadd.s32 %s296, 1
      %p300 = scmp.eq.s32.totalorder %s21, 1
      %p301 = scmp.ne.s32.totalorder %s296, %s298
      %p302 = scmp.eq.s32.totalorder %s21, 0
      %p303 = por %p301, %p302
      %p304 = scmp.ne.s32.totalorder %s296, %s298
      %p305 = scmp.eq.s32.totalorder %s26, 1
      %p306 = por %p304, %p305
      %p307 = scmp.ne.s32.totalorder %s298, %s299
      %p308 = scmp.eq.s32.totalorder %s26, 0
      %p309 = por %p307, %p308
      %p310 = scmp.ne.s32.totalorder %s298, %s299
      %p311 = scmp.eq.s32.totalorder %s27, 1
      %p312 = por %p310, %p311
      %p314 = scmp.ne.s32.totalorder %s299, %s313
      %p315 = scmp.eq.s32.totalorder %s27, 0
      %p316 = por %p314, %p315
      %s318 = sadd.s32 %s317, 1
      %p321 = scmp.eq.s32.totalorder %s21, 1
      %p322 = scmp.ne.s32.totalorder %s317, %s319
      %p323 = scmp.eq.s32.totalorder %s21, 0
      %p324 = por %p322, %p323
      %p325 = scmp.ne.s32.totalorder %s317, %s319
      %p326 = scmp.eq.s32.totalorder %s26, 1
      %p327 = por %p325, %p326
      %p328 = scmp.ne.s32.totalorder %s319, %s320
      %p329 = scmp.eq.s32.totalorder %s26, 0
      %p330 = por %p328, %p329
      %p331 = scmp.ne.s32.totalorder %s319, %s320
      %p332 = scmp.eq.s32.totalorder %s27, 1
      %p333 = por %p331, %p332
      %p335 = scmp.ne.s32.totalorder %s320, %s334
      %p336 = scmp.eq.s32.totalorder %s27, 0
      %p337 = por %p335, %p336
      %s339 = sadd.s32 %s338, 1
      %p342 = scmp.eq.s32.totalorder %s21, 1
      %p343 = scmp.ne.s32.totalorder %s338, %s340
      %p344 = scmp.eq.s32.totalorder %s21, 0
      %p345 = por %p343, %p344
      %p346 = scmp.ne.s32.totalorder %s338, %s340
      %p347 = scmp.eq.s32.totalorder %s26, 1
      %p348 = por %p346, %p347
      %p349 = scmp.ne.s32.totalorder %s340, %s341
      %p350 = scmp.eq.s32.totalorder %s26, 0
      %p351 = por %p349, %p350
      %p352 = scmp.ne.s32.totalorder %s340, %s341
      %p353 = scmp.eq.s32.totalorder %s27, 1
      %p354 = por %p352, %p353
      %p356 = scmp.ne.s32.totalorder %s341, %s355
      %p357 = scmp.eq.s32.totalorder %s27, 0
      %p358 = por %p356, %p357
      %p359 = scmp.le.s32.totalorder 1, %s21
      %p360 = scmp.lt.s32.totalorder %s21, 3
      %p361 = pnand %p359, %p360
      %p362 = pneg %p361
      // Predicated region
      $region9: #{tpu_custom_call.1} parent=5 // pred_check
        _
      $region10: #{tpu_custom_call.1} parent=5 // pred_check_branch
        %364 = sbr.rel (%p361) target = $region12
      $region11: #{tpu_custom_call.1} parent=5 // pred_region
        %s365 = ssub.s32 %s21, 1
        // Predicated region
        $region13: #{tpu_custom_call.1} parent=11 // pred_check
          %p366 = pneg %p120
        $region14: #{tpu_custom_call.1} parent=11 // pred_check_branch
          %368 = sbr.rel (%p366) target = $region16
        $region15: #{tpu_custom_call.1} parent=11 // pred_region
          _
        $region16: #{tpu_custom_call.1} parent=11 // pred_fallthru
          _
        // Predicated region
        $region17: #{tpu_custom_call.1} parent=11 // pred_check
          %p369 = pneg %p141
        $region18: #{tpu_custom_call.1} parent=11 // pred_check_branch
          %371 = sbr.rel (%p369) target = $region20
        $region19: #{tpu_custom_call.1} parent=11 // pred_region
          _
        $region20: #{tpu_custom_call.1} parent=11 // pred_fallthru
          _
        // Predicated region
        $region21: #{tpu_custom_call.1} parent=11 // pred_check
          %p372 = pneg %p162
        $region22: #{tpu_custom_call.1} parent=11 // pred_check_branch
          %374 = sbr.rel (%p372) target = $region24
        $region23: #{tpu_custom_call.1} parent=11 // pred_region
          _
        $region24: #{tpu_custom_call.1} parent=11 // pred_fallthru
          _
        // Predicated region
        $region25: #{tpu_custom_call.1} parent=11 // pred_check
          %p375 = pneg %p183
        $region26: #{tpu_custom_call.1} parent=11 // pred_check_branch
          %377 = sbr.rel (%p375) target = $region28
        $region27: #{tpu_custom_call.1} parent=11 // pred_region
          _
        $region28: #{tpu_custom_call.1} parent=11 // pred_fallthru
          _
        // Predicated region
        $region29: #{tpu_custom_call.1} parent=11 // pred_check
          %p378 = pneg %p204
        $region30: #{tpu_custom_call.1} parent=11 // pred_check_branch
          %380 = sbr.rel (%p378) target = $region32
        $region31: #{tpu_custom_call.1} parent=11 // pred_region
          _
        $region32: #{tpu_custom_call.1} parent=11 // pred_fallthru
          _
        // Predicated region
        $region33: #{tpu_custom_call.1} parent=11 // pred_check
          %p381 = pneg %p225
        $region34: #{tpu_custom_call.1} parent=11 // pred_check_branch
          %383 = sbr.rel (%p381) target = $region36
        $region35: #{tpu_custom_call.1} parent=11 // pred_region
          _
        $region36: #{tpu_custom_call.1} parent=11 // pred_fallthru
          _
        // Predicated region
        $region37: #{tpu_custom_call.1} parent=11 // pred_check
          %p384 = pneg %p246
        $region38: #{tpu_custom_call.1} parent=11 // pred_check_branch
          %386 = sbr.rel (%p384) target = $region40
        $region39: #{tpu_custom_call.1} parent=11 // pred_region
          _
        $region40: #{tpu_custom_call.1} parent=11 // pred_fallthru
          _
        // Predicated region
        $region41: #{tpu_custom_call.1} parent=11 // pred_check
          %p387 = pneg %p267
        $region42: #{tpu_custom_call.1} parent=11 // pred_check_branch
          %389 = sbr.rel (%p387) target = $region44
        $region43: #{tpu_custom_call.1} parent=11 // pred_region
          _
        $region44: #{tpu_custom_call.1} parent=11 // pred_fallthru
          _
        // Predicated region
        $region45: #{tpu_custom_call.1} parent=11 // pred_check
          %p390 = pneg %p288
        $region46: #{tpu_custom_call.1} parent=11 // pred_check_branch
          %392 = sbr.rel (%p390) target = $region48
        $region47: #{tpu_custom_call.1} parent=11 // pred_region
          _
        $region48: #{tpu_custom_call.1} parent=11 // pred_fallthru
          _
        // Predicated region
        $region49: #{tpu_custom_call.1} parent=11 // pred_check
          %p393 = pneg %p309
        $region50: #{tpu_custom_call.1} parent=11 // pred_check_branch
          %395 = sbr.rel (%p393) target = $region52
        $region51: #{tpu_custom_call.1} parent=11 // pred_region
          _
        $region52: #{tpu_custom_call.1} parent=11 // pred_fallthru
          _
        // Predicated region
        $region53: #{tpu_custom_call.1} parent=11 // pred_check
          %p396 = pneg %p330
        $region54: #{tpu_custom_call.1} parent=11 // pred_check_branch
          %398 = sbr.rel (%p396) target = $region56
        $region55: #{tpu_custom_call.1} parent=11 // pred_region
          _
        $region56: #{tpu_custom_call.1} parent=11 // pred_fallthru
          _
      $region12: #{tpu_custom_call.1} parent=5 // pred_fallthru
        _
      %p399 = scmp.lt.s32.totalorder %s21, 2
      // Predicated region
      $region57: #{tpu_custom_call.1} parent=5 // pred_check
        %p400 = pneg %p399
      $region58: #{tpu_custom_call.1} parent=5 // pred_check_branch
        %402 = sbr.rel (%p400) target = $region60
      $region59: #{tpu_custom_call.1} parent=5 // pred_region
        // Predicated region
        $region61: #{tpu_custom_call.1} parent=59 // pred_check
          %p403 = pneg %p41
        $region62: #{tpu_custom_call.1} parent=59 // pred_check_branch
          %405 = sbr.rel (%p403) target = $region64
        $region63: #{tpu_custom_call.1} parent=59 // pred_region
          %s406 = smul.u32 16, %s21
          %p407 = scmp.lt.s32.totalorder %s406, 31
          %s408 = scalar_select %p407, %s406, 31
          %s409 = smul.addr %s408, 8
          %s410 = scalar_lea.vmem %s0, %s409
          %s411 = smul.u32 16, %s21
        $region64: #{tpu_custom_call.1} parent=59 // pred_fallthru
          _
        // Predicated region
        $region65: #{tpu_custom_call.1} parent=59 // pred_check
          %p412 = pneg %p67
        $region66: #{tpu_custom_call.1} parent=59 // pred_check_branch
          %414 = sbr.rel (%p412) target = $region68
        $region67: #{tpu_custom_call.1} parent=59 // pred_region
          %s415 = smul.u32 16, %s21
          %p416 = scmp.lt.s32.totalorder %s415, 31
          %s417 = scalar_select %p416, %s415, 31
          %s418 = smul.addr %s417, 8
          %s419 = scalar_lea.vmem %s1, %s418
          %s420 = smul.u32 16, %s21
        $region68: #{tpu_custom_call.1} parent=59 // pred_fallthru
          _
        // Predicated region
        $region69: #{tpu_custom_call.1} parent=59 // pred_check
          %p421 = pneg %p93
        $region70: #{tpu_custom_call.1} parent=59 // pred_check_branch
          %423 = sbr.rel (%p421) target = $region72
        $region71: #{tpu_custom_call.1} parent=59 // pred_region
          %p424 = scmp.lt.s32.totalorder %s21, 1
          %s425 = scalar_select %p424, %s21, 1
          %s426 = smul.addr %s425, 4
          %s427 = scalar_lea.vmem %s2, %s426
        $region72: #{tpu_custom_call.1} parent=59 // pred_fallthru
          _
      $region60: #{tpu_custom_call.1} parent=5 // pred_fallthru
        _
      %p428 = scmp.le.s32.totalorder 1, %s21
      %p429 = scmp.lt.s32.totalorder %s21, 3
      %p430 = pnand %p428, %p429
      %p431 = pneg %p430
      // Predicated region
      $region73: #{tpu_custom_call.1} parent=5 // pred_check
        _
      $region74: #{tpu_custom_call.1} parent=5 // pred_check_branch
        %433 = sbr.rel (%p430) target = $region76
      $region75: #{tpu_custom_call.1} parent=5 // pred_region
        %s434 = ssub.s32 %s21, 1
        %s435 = smul.u32 16, %s26
        %p436 = scmp.lt.s32.totalorder %s435, 31
        %s437 = scalar_select %p436, %s435, 31
        %s438 = smul.addr %s437, 8
        %s439 = scalar_lea.vmem %s0, %s438
        %p440 = pneg %p47
        %p441 = pneg %p44
        %s442 = smul.u32 16, %s26
        %p443 = scmp.lt.s32.totalorder %s442, 31
        %s444 = scalar_select %p443, %s442, 31
        %s445 = smul.addr %s444, 8
        %s446 = scalar_lea.vmem %s1, %s445
        %p447 = pneg %p73
        %p448 = pneg %p70
        %p449 = scmp.lt.s32.totalorder %s26, 1
        %s450 = scalar_select %p449, %s26, 1
        %s451 = smul.addr %s450, 4
        %s452 = scalar_lea.vmem %s2, %s451
        %p453 = pneg %p99
        %p454 = pneg %p96
        %p455 = pneg %p120
        %p456 = pneg %p117
        %p457 = pneg %p141
        %p458 = pneg %p138
        %p459 = pneg %p162
        %p460 = pneg %p159
        %p461 = pneg %p183
        %p462 = pneg %p180
        %p463 = pneg %p204
        %p464 = pneg %p201
        %p465 = pneg %p225
        %p466 = pneg %p222
        %p467 = pneg %p246
        %p468 = pneg %p243
        %p469 = pneg %p267
        %p470 = pneg %p264
        %p471 = pneg %p288
        %p472 = pneg %p285
        %p473 = pneg %p309
        %p474 = pneg %p306
        %p475 = pneg %p330
        %p476 = pneg %p327
        %p477 = pneg %p351
        %p478 = pneg %p348
        %s479 = smul.u32 16, %s26
        %p480 = scmp.lt.s32.totalorder %s479, 31
        %s481 = scalar_select %p480, %s479, 31
        %s482 = smul.addr %s481, 8
        %s483 = scalar_lea.vmem %s0, %s482
        %s484 = smul.u32 16, %s26
        %s485 = smul.u32 16, %s26
        %p486 = scmp.lt.s32.totalorder %s485, 31
        %s487 = scalar_select %p486, %s485, 31
        %s488 = smul.addr %s487, 8
        %s489 = scalar_lea.vmem %s1, %s488
        %s490 = smul.u32 16, %s26
        %p491 = scmp.lt.s32.totalorder %s26, 1
        %s492 = scalar_select %p491, %s26, 1
        %s493 = smul.addr %s492, 4
        %s494 = scalar_lea.vmem %s2, %s493
        %p495 = scmp.eq.s32.totalorder %s26, 0
        // Predicated region
        $region77: #{tpu_custom_call.1} parent=75 // pred_check
          %p496 = pneg %p495
        $region78: #{tpu_custom_call.1} parent=75 // pred_check_branch
          %498 = sbr.rel (%p496) target = $region80
        $region79: #{tpu_custom_call.1} parent=75 // pred_region
          %v499 = vld [vmem:[%s3] sm:$0xf]
          %v500 = vld [vmem:[%s7] sm:$0xff]
          %v501 = vld [vmem:[%s7 + $0x8] sm:$0xff]
          %v502 = vld [vmem:[%s7 + $0x10] sm:$0xff]
          %v503 = vld [vmem:[%s7 + $0x18] sm:$0xff]
          %v504 = vld [vmem:[%s8] sm:$0x1]
          %v506 = vlaneseq
          %v507 = vshrl.u32 %v506, 7
          %v508 = vsub.s32 0, %v507
          %v509 = vrot.slane %v504, %v508
          %vm511 = vcmask 261120
          %v513 = vsel %vm511, %v499, 0
          %515 = vmatprep.subr.mxu0 0.0
          %516 = vmatpush1.msra.mxu0 0.0
          %517 = vmatprep.subr.mxu0 0.0
          %518 = vmatpush1.msra.mxu0 0.0
          %519 = vmatprep.subr.mxu0 0.0
          %520 = vmatpush1.msra.mxu0 0.0
          %521 = vmatprep.subr.mxu0 0.0
          %522 = vmatpush1.msra.mxu0 0.0
          %523 = vmatprep.subr.mxu0 0.0
          %524 = vmatpush1.msra.mxu0 0.0
          %525 = vmatprep.subr.mxu0 0.0
          %526 = vmatpush1.msra.mxu0 0.0
          %527 = vmatprep.subr.mxu0 0.0
          %528 = vmatpush1.msra.mxu0 0.0
          %529 = vmatprep.subr.mxu0 0.0
          %530 = vmatpush1.msra.mxu0 0.0
          %531 = vmatprep.subr.mxu0 0.0
          %532 = vmatpush1.msra.mxu0 0.0
          %533 = vmatprep.subr.mxu0 0.0
          %534 = vmatpush1.msra.mxu0 0.0
          %535 = vmatprep.subr.mxu0 0.0
          %536 = vmatpush1.msra.mxu0 0.0
          %537 = vmatprep.subr.mxu0 0.0
          %538 = vmatpush1.msra.mxu0 0.0
          %539 = vmatprep.subr.mxu0 0.0
          %540 = vmatpush1.msra.mxu0 %v503
          %541 = vmatprep.subr.mxu0 0.0
          %542 = vmatpush1.msra.mxu0 %v502
          %543 = vmatprep.subr.mxu0 0.0
          %544 = vmatpush1.msra.mxu0 %v501
          %545 = vmatprep.subr.mxu0 0.0
          %546 = vmatpush1.msra.mxu0 %v500
          %547 = vmatprep.subr.mxu0 0.0
          %548 = vmatpush2.msra.mxu0 0.0
          %549 = vmatprep.subr.mxu0 0.0
          %550 = vmatpush2.msra.mxu0 0.0
          %551 = vmatprep.subr.mxu0 0.0
          %552 = vmatpush2.msra.mxu0 0.0
          %553 = vmatprep.subr.mxu0 0.0
          %554 = vmatpush2.msra.mxu0 0.0
          %555 = vmatprep.subr.mxu0 0.0
          %556 = vmatpush2.msra.mxu0 0.0
          %557 = vmatprep.subr.mxu0 0.0
          %558 = vmatpush2.msra.mxu0 0.0
          %559 = vmatprep.subr.mxu0 0.0
          %560 = vmatpush2.msra.mxu0 0.0
          %561 = vmatprep.subr.mxu0 0.0
          %562 = vmatpush2.msra.mxu0 0.0
          %563 = vmatprep.subr.mxu0 0.0
          %564 = vmatpush2.msra.mxu0 0.0
          %565 = vmatprep.subr.mxu0 0.0
          %566 = vmatpush2.msra.mxu0 0.0
          %567 = vmatprep.subr.mxu0 0.0
          %568 = vmatpush2.msra.mxu0 0.0
          %569 = vmatprep.subr.mxu0 0.0
          %570 = vmatpush2.msra.mxu0 0.0
          %571 = vmatprep.subr.mxu0 0.0
          %572 = vmatpush2.msra.mxu0 0.0
          %573 = vmatprep.subr.mxu0 0.0
          %574 = vmatpush2.msra.mxu0 0.0
          %575 = vmatprep.subr.mxu0 0.0
          %576 = vmatpush2.msra.mxu0 0.0
          %577 = vmatprep.subr.mxu0 0.0
          %578 = vmatpush2.msra.mxu0 0.0
          %579 = vmatprep.mubr.f32.mxu0 0.0
          %580 = vmatmul.mubr.f32.gmra.mxu0 %v513
          %v581 = vpop.f32.mrf.mxu0
          %v582 = vadd.f32 %v509, %v581
          %v583 = vpop.f32.mrf.mxu0
          %584 = vdwg.mxu0
          %v585 = vld [vmem:[%s4] sm:$0xf]
          %587 = vrot.lane.b32.xlu0 %v585, 32
          %v588 = vpop.permute.xlu0 %587
          %v590 = vsel %vm511, %v582, %v588
          %vm591 = vcmask 519168
          %592 = vst.msk [vmem:[#allocation2] sm:$0xf] %vm591, %v590
          %vm593 = vcmask 27648
          %594 = vst.msk [vmem:[#allocation3] sm:$0xf] %vm593, -1e+30
          %595 = vst.msk [vmem:[#allocation4] sm:$0xf] %vm593, 0.0
          %vm596 = vcmask 257024
          %597 = vst.msk [vmem:[#allocation5] sm:$0xf] %vm596, 0.0
        $region80: #{tpu_custom_call.1} parent=75 // pred_fallthru
          _
        %v598 = vld [vmem:[%s494] sm:$0xf]
        %vm599 = vcmp.gt.f32.partialorder %v598, 0.0
        %v600 = vsel %vm599, 0.0, -1e+30
        %vm601 = vcmask 1043456
        %v602 = vsel %vm601, %v600, -inf
        %v603 = vrot.slane %v602, 4
        %v604 = vmax.f32 %v602, %v603
        %v605 = vrot.slane %v604, 2
        %v606 = vmax.f32 %v604, %v605
        %v607 = vrot.slane %v606, 1
        %v608 = vmax.f32 %v606, %v607
        %v609 = vld [vmem:[%s483] sm:$0xff]
        %v610 = vld [vmem:[%s483 + $0x8] sm:$0xff]
        %v611 = vld [vmem:[%s483 + $0x10] sm:$0xff]
        %v612 = vld [vmem:[%s483 + $0x18] sm:$0xff]
        %v613 = vld [vmem:[%s483 + $0x20] sm:$0xff]
        %v614 = vld [vmem:[%s483 + $0x28] sm:$0xff]
        %v615 = vld [vmem:[%s483 + $0x30] sm:$0xff]
        %v616 = vld [vmem:[%s483 + $0x38] sm:$0xff]
        %v617 = vld [vmem:[%s483 + $0x40] sm:$0xff]
        %v618 = vld [vmem:[%s483 + $0x48] sm:$0xff]
        %v619 = vld [vmem:[%s483 + $0x50] sm:$0xff]
        %v620 = vld [vmem:[%s483 + $0x58] sm:$0xff]
        %v621 = vld [vmem:[%s483 + $0x60] sm:$0xff]
        %v622 = vld [vmem:[%s483 + $0x68] sm:$0xff]
        %v623 = vld [vmem:[%s483 + $0x70] sm:$0xff]
        %v624 = vld [vmem:[%s483 + $0x78] sm:$0xff]
        %v625 = vld [vmem:[%s5] sm:$0xff]
        %v626 = vld [vmem:[%s5 + $0x8] sm:$0xff]
        %v627 = vld [vmem:[%s5 + $0x10] sm:$0xff]
        %v628 = vld [vmem:[%s5 + $0x18] sm:$0xff]
        %v629 = vld [vmem:[%s6] sm:$0x1]
        %v631 = vlaneseq
        %v632 = vshrl.u32 %v631, 7
        %v633 = vsub.s32 0, %v632
        %v634 = vrot.slane %v629, %v633
        %vm636 = vcmask 261120
        %v638 = vsel %vm636, %v609, 0
        %v641 = vsel %vm636, %v610, 0
        %v644 = vsel %vm636, %v611, 0
        %v647 = vsel %vm636, %v612, 0
        %v650 = vsel %vm636, %v613, 0
        %v653 = vsel %vm636, %v614, 0
        %v656 = vsel %vm636, %v615, 0
        %v659 = vsel %vm636, %v616, 0
        %v662 = vsel %vm636, %v617, 0
        %v665 = vsel %vm636, %v618, 0
        %v668 = vsel %vm636, %v619, 0
        %v671 = vsel %vm636, %v620, 0
        %v674 = vsel %vm636, %v621, 0
        %v677 = vsel %vm636, %v622, 0
        %v680 = vsel %vm636, %v623, 0
        %v683 = vsel %vm636, %v624, 0
        %685 = vmatprep.subr.mxu0 0.0
        %686 = vmatpush1.msra.mxu0 0.0
        %687 = vmatprep.subr.mxu0 0.0
        %688 = vmatpush1.msra.mxu0 0.0
        %689 = vmatprep.subr.mxu0 0.0
        %690 = vmatpush1.msra.mxu0 0.0
        %691 = vmatprep.subr.mxu0 0.0
        %692 = vmatpush1.msra.mxu0 0.0
        %693 = vmatprep.subr.mxu0 0.0
        %694 = vmatpush1.msra.mxu0 0.0
        %695 = vmatprep.subr.mxu0 0.0
        %696 = vmatpush1.msra.mxu0 0.0
        %697 = vmatprep.subr.mxu0 0.0
        %698 = vmatpush1.msra.mxu0 0.0
        %699 = vmatprep.subr.mxu0 0.0
        %700 = vmatpush1.msra.mxu0 0.0
        %701 = vmatprep.subr.mxu0 0.0
        %702 = vmatpush1.msra.mxu0 0.0
        %703 = vmatprep.subr.mxu0 0.0
        %704 = vmatpush1.msra.mxu0 0.0
        %705 = vmatprep.subr.mxu0 0.0
        %706 = vmatpush1.msra.mxu0 0.0
        %707 = vmatprep.subr.mxu0 0.0
        %708 = vmatpush1.msra.mxu0 0.0
        %709 = vmatprep.subr.mxu0 0.0
        %710 = vmatpush1.msra.mxu0 %v628
        %711 = vmatprep.subr.mxu0 0.0
        %712 = vmatpush1.msra.mxu0 %v627
        %713 = vmatprep.subr.mxu0 0.0
        %714 = vmatpush1.msra.mxu0 %v626
        %715 = vmatprep.subr.mxu0 0.0
        %716 = vmatpush1.msra.mxu0 %v625
        %717 = vmatprep.subr.mxu0 0.0
        %718 = vmatpush2.msra.mxu0 0.0
        %719 = vmatprep.subr.mxu0 0.0
        %720 = vmatpush2.msra.mxu0 0.0
        %721 = vmatprep.subr.mxu0 0.0
        %722 = vmatpush2.msra.mxu0 0.0
        %723 = vmatprep.subr.mxu0 0.0
        %724 = vmatpush2.msra.mxu0 0.0
        %725 = vmatprep.subr.mxu0 0.0
        %726 = vmatpush2.msra.mxu0 0.0
        %727 = vmatprep.subr.mxu0 0.0
        %728 = vmatpush2.msra.mxu0 0.0
        %729 = vmatprep.subr.mxu0 0.0
        %730 = vmatpush2.msra.mxu0 0.0
        %731 = vmatprep.subr.mxu0 0.0
        %732 = vmatpush2.msra.mxu0 0.0
        %733 = vmatprep.subr.mxu0 0.0
        %734 = vmatpush2.msra.mxu0 0.0
        %735 = vmatprep.subr.mxu0 0.0
        %736 = vmatpush2.msra.mxu0 0.0
        %737 = vmatprep.subr.mxu0 0.0
        %738 = vmatpush2.msra.mxu0 0.0
        %739 = vmatprep.subr.mxu0 0.0
        %740 = vmatpush2.msra.mxu0 0.0
        %741 = vmatprep.subr.mxu0 0.0
        %742 = vmatpush2.msra.mxu0 0.0
        %743 = vmatprep.subr.mxu0 0.0
        %744 = vmatpush2.msra.mxu0 0.0
        %745 = vmatprep.subr.mxu0 0.0
        %746 = vmatpush2.msra.mxu0 0.0
        %747 = vmatprep.subr.mxu0 0.0
        %748 = vmatpush2.msra.mxu0 0.0
        %749 = vmatprep.mubr.f32.mxu0 0.0
        %750 = vmatmul.mubr.f32.gmra.mxu0 %v638
        %v751 = vpop.f32.mrf.mxu0
        %v752 = vadd.f32 %v634, %v751
        %v753 = vpop.f32.mrf.mxu0
        %754 = vmatprep.mubr.f32.mxu0 0.0
        %755 = vmatmul.mubr.f32.gmra.mxu0 %v641
        %v756 = vpop.f32.mrf.mxu0
        %v757 = vadd.f32 %v634, %v756
        %v758 = vpop.f32.mrf.mxu0
        %759 = vmatprep.mubr.f32.mxu0 0.0
        %760 = vmatmul.mubr.f32.gmra.mxu0 %v644
        %v761 = vpop.f32.mrf.mxu0
        %v762 = vadd.f32 %v634, %v761
        %v763 = vpop.f32.mrf.mxu0
        %764 = vmatprep.mubr.f32.mxu0 0.0
        %765 = vmatmul.mubr.f32.gmra.mxu0 %v647
        %v766 = vpop.f32.mrf.mxu0
        %v767 = vadd.f32 %v634, %v766
        %v768 = vpop.f32.mrf.mxu0
        %769 = vmatprep.mubr.f32.mxu0 0.0
        %770 = vmatmul.mubr.f32.gmra.mxu0 %v650
        %v771 = vpop.f32.mrf.mxu0
        %v772 = vadd.f32 %v634, %v771
        %v773 = vpop.f32.mrf.mxu0
        %774 = vmatprep.mubr.f32.mxu0 0.0
        %775 = vmatmul.mubr.f32.gmra.mxu0 %v653
        %v776 = vpop.f32.mrf.mxu0
        %v777 = vadd.f32 %v634, %v776
        %v778 = vpop.f32.mrf.mxu0
        %779 = vmatprep.mubr.f32.mxu0 0.0
        %780 = vmatmul.mubr.f32.gmra.mxu0 %v656
        %v781 = vpop.f32.mrf.mxu0
        %v782 = vadd.f32 %v634, %v781
        %v783 = vpop.f32.mrf.mxu0
        %784 = vmatprep.mubr.f32.mxu0 0.0
        %785 = vmatmul.mubr.f32.gmra.mxu0 %v659
        %v786 = vpop.f32.mrf.mxu0
        %v787 = vadd.f32 %v634, %v786
        %v788 = vpop.f32.mrf.mxu0
        %789 = vmatprep.mubr.f32.mxu0 0.0
        %790 = vmatmul.mubr.f32.gmra.mxu0 %v662
        %v791 = vpop.f32.mrf.mxu0
        %v792 = vadd.f32 %v634, %v791
        %v793 = vpop.f32.mrf.mxu0
        %794 = vmatprep.mubr.f32.mxu0 0.0
        %795 = vmatmul.mubr.f32.gmra.mxu0 %v665
        %v796 = vpop.f32.mrf.mxu0
        %v797 = vadd.f32 %v634, %v796
        %v798 = vpop.f32.mrf.mxu0
        %799 = vmatprep.mubr.f32.mxu0 0.0
        %800 = vmatmul.mubr.f32.gmra.mxu0 %v668
        %v801 = vpop.f32.mrf.mxu0
        %v802 = vadd.f32 %v634, %v801
        %v803 = vpop.f32.mrf.mxu0
        %804 = vmatprep.mubr.f32.mxu0 0.0
        %805 = vmatmul.mubr.f32.gmra.mxu0 %v671
        %v806 = vpop.f32.mrf.mxu0
        %v807 = vadd.f32 %v634, %v806
        %v808 = vpop.f32.mrf.mxu0
        %809 = vmatprep.mubr.f32.mxu0 0.0
        %810 = vmatmul.mubr.f32.gmra.mxu0 %v674
        %v811 = vpop.f32.mrf.mxu0
        %v812 = vadd.f32 %v634, %v811
        %v813 = vpop.f32.mrf.mxu0
        %814 = vmatprep.mubr.f32.mxu0 0.0
        %815 = vmatmul.mubr.f32.gmra.mxu0 %v677
        %v816 = vpop.f32.mrf.mxu0
        %v817 = vadd.f32 %v634, %v816
        %v818 = vpop.f32.mrf.mxu0
        %819 = vmatprep.mubr.f32.mxu0 0.0
        %820 = vmatmul.mubr.f32.gmra.mxu0 %v680
        %v821 = vpop.f32.mrf.mxu0
        %v822 = vadd.f32 %v634, %v821
        %v823 = vpop.f32.mrf.mxu0
        %824 = vmatprep.mubr.f32.mxu0 0.0
        %825 = vmatmul.mubr.f32.gmra.mxu0 %v683
        %v826 = vpop.f32.mrf.mxu0
        %v827 = vadd.f32 %v634, %v826
        %v828 = vpop.f32.mrf.mxu0
        %829 = vdwg.mxu0
        %v830 = vld [vmem:[#allocation2] sm:$0xf]
        %831 = vxpose.xlu0.b32.start [1/16] %v598, 128
        %832 = vxpose.xlu0.b32.cont [2/16] 0.0, 128
        %833 = vxpose.xlu0.b32.cont [3/16] 0.0, 128
        %834 = vxpose.xlu0.b32.cont [4/16] 0.0, 128
        %835 = vxpose.xlu0.b32.cont [5/16] 0.0, 128
        %836 = vxpose.xlu0.b32.cont [6/16] 0.0, 128
        %837 = vxpose.xlu0.b32.cont [7/16] 0.0, 128
        %838 = vxpose.xlu0.b32.cont [8/16] 0.0, 128
        %839 = vxpose.xlu0.b32.cont [9/16] 0.0, 128
        %840 = vxpose.xlu0.b32.cont [10/16] 0.0, 128
        %841 = vxpose.xlu0.b32.cont [11/16] 0.0, 128
        %842 = vxpose.xlu0.b32.cont [12/16] 0.0, 128
        %843 = vxpose.xlu0.b32.cont [13/16] 0.0, 128
        %844 = vxpose.xlu0.b32.cont [14/16] 0.0, 128
        %845 = vxpose.xlu0.b32.cont [15/16] 0.0, 128
        %846 = vxpose.xlu0.b32.end [16/16] 0.0, 128
        %v847 = vpop.trf.xlu0
        %v848 = vpop.trf.xlu0
        %v849 = vpop.trf.xlu0
        %v850 = vpop.trf.xlu0
        %v851 = vpop.trf.xlu0
        %v852 = vpop.trf.xlu0
        %v853 = vpop.trf.xlu0
        %v854 = vpop.trf.xlu0
        %v855 = vpop.trf.xlu0
        %v856 = vpop.trf.xlu0
        %v857 = vpop.trf.xlu0
        %v858 = vpop.trf.xlu0
        %v859 = vpop.trf.xlu0
        %v860 = vpop.trf.xlu0
        %v861 = vpop.trf.xlu0
        %v862 = vpop.trf.xlu0
        %vm863 = vcmask 31744
        %v865 = vsel %vm863, %v847, 0
        %v868 = vsel %vm863, %v848, 0
        %v871 = vsel %vm863, %v849, 0
        %v874 = vsel %vm863, %v850, 0
        %v877 = vsel %vm863, %v851, 0
        %v880 = vsel %vm863, %v852, 0
        %v883 = vsel %vm863, %v853, 0
        %v886 = vsel %vm863, %v854, 0
        %v889 = vsel %vm863, %v855, 0
        %v892 = vsel %vm863, %v856, 0
        %v895 = vsel %vm863, %v857, 0
        %v898 = vsel %vm863, %v858, 0
        %v901 = vsel %vm863, %v859, 0
        %v904 = vsel %vm863, %v860, 0
        %v907 = vsel %vm863, %v861, 0
        %v910 = vsel %vm863, %v862, 0
        %v913 = vsel %vm601, %v830, 0
        %915 = vmatprep.subr.mxu0 0.0
        %916 = vmatpush1.msra.mxu0 0.0
        %917 = vmatprep.subr.mxu0 0.0
        %918 = vmatpush1.msra.mxu0 0.0
        %919 = vmatprep.subr.mxu0 0.0
        %920 = vmatpush1.msra.mxu0 0.0
        %921 = vmatprep.subr.mxu0 0.0
        %922 = vmatpush1.msra.mxu0 0.0
        %923 = vmatprep.subr.mxu0 0.0
        %924 = vmatpush1.msra.mxu0 0.0
        %925 = vmatprep.subr.mxu0 0.0
        %926 = vmatpush1.msra.mxu0 0.0
        %927 = vmatprep.subr.mxu0 0.0
        %928 = vmatpush1.msra.mxu0 0.0
        %929 = vmatprep.subr.mxu0 0.0
        %930 = vmatpush1.msra.mxu0 0.0
        %931 = vmatprep.subr.mxu0 0.0
        %932 = vmatpush1.msra.mxu0 0.0
        %933 = vmatprep.subr.mxu0 0.0
        %934 = vmatpush1.msra.mxu0 0.0
        %935 = vmatprep.subr.mxu0 0.0
        %936 = vmatpush1.msra.mxu0 0.0
        %937 = vmatprep.subr.mxu0 0.0
        %938 = vmatpush1.msra.mxu0 0.0
        %939 = vmatprep.subr.mxu0 0.0
        %940 = vmatpush1.msra.mxu0 0.0
        %941 = vmatprep.subr.mxu0 0.0
        %942 = vmatpush1.msra.mxu0 0.0
        %943 = vmatprep.subr.mxu0 0.0
        %944 = vmatpush1.msra.mxu0 0.0
        %945 = vmatprep.subr.mxu0 0.0
        %946 = vmatpush1.msra.mxu0 %v913
        %947 = vmatprep.subr.mxu0 0.0
        %948 = vmatpush2.msra.mxu0 0.0
        %949 = vmatprep.subr.mxu0 0.0
        %950 = vmatpush2.msra.mxu0 0.0
        %951 = vmatprep.subr.mxu0 0.0
        %952 = vmatpush2.msra.mxu0 0.0
        %953 = vmatprep.subr.mxu0 0.0
        %954 = vmatpush2.msra.mxu0 0.0
        %955 = vmatprep.subr.mxu0 0.0
        %956 = vmatpush2.msra.mxu0 0.0
        %957 = vmatprep.subr.mxu0 0.0
        %958 = vmatpush2.msra.mxu0 0.0
        %959 = vmatprep.subr.mxu0 0.0
        %960 = vmatpush2.msra.mxu0 0.0
        %961 = vmatprep.subr.mxu0 0.0
        %962 = vmatpush2.msra.mxu0 0.0
        %963 = vmatprep.subr.mxu0 0.0
        %964 = vmatpush2.msra.mxu0 0.0
        %965 = vmatprep.subr.mxu0 0.0
        %966 = vmatpush2.msra.mxu0 0.0
        %967 = vmatprep.subr.mxu0 0.0
        %968 = vmatpush2.msra.mxu0 0.0
        %969 = vmatprep.subr.mxu0 0.0
        %970 = vmatpush2.msra.mxu0 0.0
        %971 = vmatprep.subr.mxu0 0.0
        %972 = vmatpush2.msra.mxu0 0.0
        %973 = vmatprep.subr.mxu0 0.0
        %974 = vmatpush2.msra.mxu0 0.0
        %975 = vmatprep.subr.mxu0 0.0
        %976 = vmatpush2.msra.mxu0 0.0
        %977 = vmatprep.subr.mxu0 0.0
        %978 = vmatpush2.msra.mxu0 0.0
        %979 = vmatprep.mubr.f32.mxu0 0.0
        %980 = vmatmul.mubr.f32.gmra.mxu0 %v865
        %v981 = vpop.f32.mrf.mxu0
        %v982 = vadd.f32 0.0, %v981
        %v983 = vpop.f32.mrf.mxu0
        %984 = vmatprep.mubr.f32.mxu0 0.0
        %985 = vmatmul.mubr.f32.gmra.mxu0 %v868
        %v986 = vpop.f32.mrf.mxu0
        %v987 = vadd.f32 0.0, %v986
        %v988 = vpop.f32.mrf.mxu0
        %989 = vmatprep.mubr.f32.mxu0 0.0
        %990 = vmatmul.mubr.f32.gmra.mxu0 %v871
        %v991 = vpop.f32.mrf.mxu0
        %v992 = vadd.f32 0.0, %v991
        %v993 = vpop.f32.mrf.mxu0
        %994 = vmatprep.mubr.f32.mxu0 0.0
        %995 = vmatmul.mubr.f32.gmra.mxu0 %v874
        %v996 = vpop.f32.mrf.mxu0
        %v997 = vadd.f32 0.0, %v996
        %v998 = vpop.f32.mrf.mxu0
        %999 = vmatprep.mubr.f32.mxu0 0.0
        %1000 = vmatmul.mubr.f32.gmra.mxu0 %v877
        %v1001 = vpop.f32.mrf.mxu0
        %v1002 = vadd.f32 0.0, %v1001
        %v1003 = vpop.f32.mrf.mxu0
        %1004 = vmatprep.mubr.f32.mxu0 0.0
        %1005 = vmatmul.mubr.f32.gmra.mxu0 %v880
        %v1006 = vpop.f32.mrf.mxu0
        %v1007 = vadd.f32 0.0, %v1006
        %v1008 = vpop.f32.mrf.mxu0
        %1009 = vmatprep.mubr.f32.mxu0 0.0
        %1010 = vmatmul.mubr.f32.gmra.mxu0 %v883
        %v1011 = vpop.f32.mrf.mxu0
        %v1012 = vadd.f32 0.0, %v1011
        %v1013 = vpop.f32.mrf.mxu0
        %1014 = vmatprep.mubr.f32.mxu0 0.0
        %1015 = vmatmul.mubr.f32.gmra.mxu0 %v886
        %v1016 = vpop.f32.mrf.mxu0
        %v1017 = vadd.f32 0.0, %v1016
        %v1018 = vpop.f32.mrf.mxu0
        %1019 = vmatprep.mubr.f32.mxu0 0.0
        %1020 = vmatmul.mubr.f32.gmra.mxu0 %v889
        %v1021 = vpop.f32.mrf.mxu0
        %v1022 = vadd.f32 0.0, %v1021
        %v1023 = vpop.f32.mrf.mxu0
        %1024 = vmatprep.mubr.f32.mxu0 0.0
        %1025 = vmatmul.mubr.f32.gmra.mxu0 %v892
        %v1026 = vpop.f32.mrf.mxu0
        %v1027 = vadd.f32 0.0, %v1026
        %v1028 = vpop.f32.mrf.mxu0
        %1029 = vmatprep.mubr.f32.mxu0 0.0
        %1030 = vmatmul.mubr.f32.gmra.mxu0 %v895
        %v1031 = vpop.f32.mrf.mxu0
        %v1032 = vadd.f32 0.0, %v1031
        %v1033 = vpop.f32.mrf.mxu0
        %1034 = vmatprep.mubr.f32.mxu0 0.0
        %1035 = vmatmul.mubr.f32.gmra.mxu0 %v898
        %v1036 = vpop.f32.mrf.mxu0
        %v1037 = vadd.f32 0.0, %v1036
        %v1038 = vpop.f32.mrf.mxu0
        %1039 = vmatprep.mubr.f32.mxu0 0.0
        %1040 = vmatmul.mubr.f32.gmra.mxu0 %v901
        %v1041 = vpop.f32.mrf.mxu0
        %v1042 = vadd.f32 0.0, %v1041
        %v1043 = vpop.f32.mrf.mxu0
        %1044 = vmatprep.mubr.f32.mxu0 0.0
        %1045 = vmatmul.mubr.f32.gmra.mxu0 %v904
        %v1046 = vpop.f32.mrf.mxu0
        %v1047 = vadd.f32 0.0, %v1046
        %v1048 = vpop.f32.mrf.mxu0
        %1049 = vmatprep.mubr.f32.mxu0 0.0
        %1050 = vmatmul.mubr.f32.gmra.mxu0 %v907
        %v1051 = vpop.f32.mrf.mxu0
        %v1052 = vadd.f32 0.0, %v1051
        %v1053 = vpop.f32.mrf.mxu0
        %1054 = vmatprep.mubr.f32.mxu0 0.0
        %1055 = vmatmul.mubr.f32.gmra.mxu0 %v910
        %v1056 = vpop.f32.mrf.mxu0
        %v1057 = vadd.f32 0.0, %v1056
        %v1058 = vpop.f32.mrf.mxu0
        %1059 = vdwg.mxu0
        %v1060 = vadd.f32 %v752, %v982
        %v1061 = vadd.f32 %v757, %v987
        %v1062 = vadd.f32 %v762, %v992
        %v1063 = vadd.f32 %v767, %v997
        %v1064 = vadd.f32 %v772, %v1002
        %v1065 = vadd.f32 %v777, %v1007
        %v1066 = vadd.f32 %v782, %v1012
        %v1067 = vadd.f32 %v787, %v1017
        %v1068 = vadd.f32 %v792, %v1022
        %v1069 = vadd.f32 %v797, %v1027
        %v1070 = vadd.f32 %v802, %v1032
        %v1071 = vadd.f32 %v807, %v1037
        %v1072 = vadd.f32 %v812, %v1042
        %v1073 = vadd.f32 %v817, %v1047
        %v1074 = vadd.f32 %v822, %v1052
        %v1075 = vadd.f32 %v827, %v1057
        %vm1076 = vcmp.gt.f32.partialorder %v1060, 0.0
        %vm1077 = vcmp.gt.f32.partialorder %v1061, 0.0
        %vm1078 = vcmp.gt.f32.partialorder %v1062, 0.0
        %vm1079 = vcmp.gt.f32.partialorder %v1063, 0.0
        %vm1080 = vcmp.gt.f32.partialorder %v1064, 0.0
        %vm1081 = vcmp.gt.f32.partialorder %v1065, 0.0
        %vm1082 = vcmp.gt.f32.partialorder %v1066, 0.0
        %vm1083 = vcmp.gt.f32.partialorder %v1067, 0.0
        %vm1084 = vcmp.gt.f32.partialorder %v1068, 0.0
        %vm1085 = vcmp.gt.f32.partialorder %v1069, 0.0
        %vm1086 = vcmp.gt.f32.partialorder %v1070, 0.0
        %vm1087 = vcmp.gt.f32.partialorder %v1071, 0.0
        %vm1088 = vcmp.gt.f32.partialorder %v1072, 0.0
        %vm1089 = vcmp.gt.f32.partialorder %v1073, 0.0
        %vm1090 = vcmp.gt.f32.partialorder %v1074, 0.0
        %vm1091 = vcmp.gt.f32.partialorder %v1075, 0.0
        %v1092 = vmul.f32 %v1060, 0.01
        %v1093 = vmul.f32 %v1061, 0.01
        %v1094 = vmul.f32 %v1062, 0.01
        %v1095 = vmul.f32 %v1063, 0.01
        %v1096 = vmul.f32 %v1064, 0.01
        %v1097 = vmul.f32 %v1065, 0.01
        %v1098 = vmul.f32 %v1066, 0.01
        %v1099 = vmul.f32 %v1067, 0.01
        %v1100 = vmul.f32 %v1068, 0.01
        %v1101 = vmul.f32 %v1069, 0.01
        %v1102 = vmul.f32 %v1070, 0.01
        %v1103 = vmul.f32 %v1071, 0.01
        %v1104 = vmul.f32 %v1072, 0.01
        %v1105 = vmul.f32 %v1073, 0.01
        %v1106 = vmul.f32 %v1074, 0.01
        %v1107 = vmul.f32 %v1075, 0.01
        %v1108 = vsel %vm1076, %v1060, %v1092
        %v1109 = vsel %vm1077, %v1061, %v1093
        %v1110 = vsel %vm1078, %v1062, %v1094
        %v1111 = vsel %vm1079, %v1063, %v1095
        %v1112 = vsel %vm1080, %v1064, %v1096
        %v1113 = vsel %vm1081, %v1065, %v1097
        %v1114 = vsel %vm1082, %v1066, %v1098
        %v1115 = vsel %vm1083, %v1067, %v1099
        %v1116 = vsel %vm1084, %v1068, %v1100
        %v1117 = vsel %vm1085, %v1069, %v1101
        %v1118 = vsel %vm1086, %v1070, %v1102
        %v1119 = vsel %vm1087, %v1071, %v1103
        %v1120 = vsel %vm1088, %v1072, %v1104
        %v1121 = vsel %vm1089, %v1073, %v1105
        %v1122 = vsel %vm1090, %v1074, %v1106
        %v1123 = vsel %vm1091, %v1075, %v1107
        %v1124 = vld [vmem:[%s489] sm:$0xff]
        %v1125 = vld [vmem:[%s489 + $0x8] sm:$0xff]
        %v1126 = vld [vmem:[%s489 + $0x10] sm:$0xff]
        %v1127 = vld [vmem:[%s489 + $0x18] sm:$0xff]
        %v1128 = vld [vmem:[%s489 + $0x20] sm:$0xff]
        %v1129 = vld [vmem:[%s489 + $0x28] sm:$0xff]
        %v1130 = vld [vmem:[%s489 + $0x30] sm:$0xff]
        %v1131 = vld [vmem:[%s489 + $0x38] sm:$0xff]
        %v1132 = vld [vmem:[%s489 + $0x40] sm:$0xff]
        %v1133 = vld [vmem:[%s489 + $0x48] sm:$0xff]
        %v1134 = vld [vmem:[%s489 + $0x50] sm:$0xff]
        %v1135 = vld [vmem:[%s489 + $0x58] sm:$0xff]
        %v1136 = vld [vmem:[%s489 + $0x60] sm:$0xff]
        %v1137 = vld [vmem:[%s489 + $0x68] sm:$0xff]
        %v1138 = vld [vmem:[%s489 + $0x70] sm:$0xff]
        %v1139 = vld [vmem:[%s489 + $0x78] sm:$0xff]
        %1156 = vrot.lane.b32.xlu0 %v982, 96
        %v1157 = vpop.permute.xlu0 %1156
        %1158 = vrot.lane.b32.xlu0 %v987, 96
        %v1159 = vpop.permute.xlu0 %1158
        %1160 = vrot.lane.b32.xlu0 %v992, 96
        %v1161 = vpop.permute.xlu0 %1160
        %1162 = vrot.lane.b32.xlu0 %v997, 96
        %v1163 = vpop.permute.xlu0 %1162
        %1164 = vrot.lane.b32.xlu0 %v1002, 96
        %v1165 = vpop.permute.xlu0 %1164
        %1166 = vrot.lane.b32.xlu0 %v1007, 96
        %v1167 = vpop.permute.xlu0 %1166
        %1168 = vrot.lane.b32.xlu0 %v1012, 96
        %v1169 = vpop.permute.xlu0 %1168
        %1170 = vrot.lane.b32.xlu0 %v1017, 96
        %v1171 = vpop.permute.xlu0 %1170
        %1172 = vrot.lane.b32.xlu0 %v1022, 96
        %v1173 = vpop.permute.xlu0 %1172
        %1174 = vrot.lane.b32.xlu0 %v1027, 96
        %v1175 = vpop.permute.xlu0 %1174
        %1176 = vrot.lane.b32.xlu0 %v1032, 96
        %v1177 = vpop.permute.xlu0 %1176
        %1178 = vrot.lane.b32.xlu0 %v1037, 96
        %v1179 = vpop.permute.xlu0 %1178
        %1180 = vrot.lane.b32.xlu0 %v1042, 96
        %v1181 = vpop.permute.xlu0 %1180
        %1182 = vrot.lane.b32.xlu0 %v1047, 96
        %v1183 = vpop.permute.xlu0 %1182
        %1184 = vrot.lane.b32.xlu0 %v1052, 96
        %v1185 = vpop.permute.xlu0 %1184
        %1186 = vrot.lane.b32.xlu0 %v1057, 96
        %v1187 = vpop.permute.xlu0 %1186
        %v1204 = vadd.f32 %v1124, %v1157
        %v1205 = vadd.f32 %v1125, %v1159
        %v1206 = vadd.f32 %v1126, %v1161
        %v1207 = vadd.f32 %v1127, %v1163
        %v1208 = vadd.f32 %v1128, %v1165
        %v1209 = vadd.f32 %v1129, %v1167
        %v1210 = vadd.f32 %v1130, %v1169
        %v1211 = vadd.f32 %v1131, %v1171
        %v1212 = vadd.f32 %v1132, %v1173
        %v1213 = vadd.f32 %v1133, %v1175
        %v1214 = vadd.f32 %v1134, %v1177
        %v1215 = vadd.f32 %v1135, %v1179
        %v1216 = vadd.f32 %v1136, %v1181
        %v1217 = vadd.f32 %v1137, %v1183
        %v1218 = vadd.f32 %v1138, %v1185
        %v1219 = vadd.f32 %v1139, %v1187
        %vm1220 = vcmp.gt.f32.partialorder %v1204, 0.0
        %vm1221 = vcmp.gt.f32.partialorder %v1205, 0.0
        %vm1222 = vcmp.gt.f32.partialorder %v1206, 0.0
        %vm1223 = vcmp.gt.f32.partialorder %v1207, 0.0
        %vm1224 = vcmp.gt.f32.partialorder %v1208, 0.0
        %vm1225 = vcmp.gt.f32.partialorder %v1209, 0.0
        %vm1226 = vcmp.gt.f32.partialorder %v1210, 0.0
        %vm1227 = vcmp.gt.f32.partialorder %v1211, 0.0
        %vm1228 = vcmp.gt.f32.partialorder %v1212, 0.0
        %vm1229 = vcmp.gt.f32.partialorder %v1213, 0.0
        %vm1230 = vcmp.gt.f32.partialorder %v1214, 0.0
        %vm1231 = vcmp.gt.f32.partialorder %v1215, 0.0
        %vm1232 = vcmp.gt.f32.partialorder %v1216, 0.0
        %vm1233 = vcmp.gt.f32.partialorder %v1217, 0.0
        %vm1234 = vcmp.gt.f32.partialorder %v1218, 0.0
        %vm1235 = vcmp.gt.f32.partialorder %v1219, 0.0
        %v1236 = vmul.f32 %v1204, 0.01
        %v1237 = vmul.f32 %v1205, 0.01
        %v1238 = vmul.f32 %v1206, 0.01
        %v1239 = vmul.f32 %v1207, 0.01
        %v1240 = vmul.f32 %v1208, 0.01
        %v1241 = vmul.f32 %v1209, 0.01
        %v1242 = vmul.f32 %v1210, 0.01
        %v1243 = vmul.f32 %v1211, 0.01
        %v1244 = vmul.f32 %v1212, 0.01
        %v1245 = vmul.f32 %v1213, 0.01
        %v1246 = vmul.f32 %v1214, 0.01
        %v1247 = vmul.f32 %v1215, 0.01
        %v1248 = vmul.f32 %v1216, 0.01
        %v1249 = vmul.f32 %v1217, 0.01
        %v1250 = vmul.f32 %v1218, 0.01
        %v1251 = vmul.f32 %v1219, 0.01
        %v1252 = vsel %vm1220, %v1204, %v1236
        %v1253 = vsel %vm1221, %v1205, %v1237
        %v1254 = vsel %vm1222, %v1206, %v1238
        %v1255 = vsel %vm1223, %v1207, %v1239
        %v1256 = vsel %vm1224, %v1208, %v1240
        %v1257 = vsel %vm1225, %v1209, %v1241
        %v1258 = vsel %vm1226, %v1210, %v1242
        %v1259 = vsel %vm1227, %v1211, %v1243
        %v1260 = vsel %vm1228, %v1212, %v1244
        %v1261 = vsel %vm1229, %v1213, %v1245
        %v1262 = vsel %vm1230, %v1214, %v1246
        %v1263 = vsel %vm1231, %v1215, %v1247
        %v1264 = vsel %vm1232, %v1216, %v1248
        %v1265 = vsel %vm1233, %v1217, %v1249
        %v1266 = vsel %vm1234, %v1218, %v1250
        %v1267 = vsel %vm1235, %v1219, %v1251
        %v1268 = vld [vmem:[%s11] sm:$0xff]
        %v1269 = vld [vmem:[%s11 + $0x8] sm:$0xff]
        %v1270 = vld [vmem:[%s11 + $0x10] sm:$0xff]
        %v1271 = vld [vmem:[%s11 + $0x18] sm:$0xff]
        %v1272 = vld [vmem:[%s12] sm:$0xff]
        %v1273 = vld [vmem:[%s12 + $0x8] sm:$0xff]
        %v1274 = vld [vmem:[%s12 + $0x10] sm:$0xff]
        %v1275 = vld [vmem:[%s12 + $0x18] sm:$0xff]
        %1276 = vxpose.xlu0.b32.start [1/16] %v1272, 128
        %1277 = vxpose.xlu0.b32.cont [2/16] %v1273, 128
        %1278 = vxpose.xlu0.b32.cont [3/16] %v1274, 128
        %1279 = vxpose.xlu0.b32.cont [4/16] %v1275, 128
        %1280 = vxpose.xlu0.b32.cont [5/16] 0.0, 128
        %1281 = vxpose.xlu0.b32.cont [6/16] 0.0, 128
        %1282 = vxpose.xlu0.b32.cont [7/16] 0.0, 128
        %1283 = vxpose.xlu0.b32.cont [8/16] 0.0, 128
        %1284 = vxpose.xlu0.b32.cont [9/16] 0.0, 128
        %1285 = vxpose.xlu0.b32.cont [10/16] 0.0, 128
        %1286 = vxpose.xlu0.b32.cont [11/16] 0.0, 128
        %1287 = vxpose.xlu0.b32.cont [12/16] 0.0, 128
        %1288 = vxpose.xlu0.b32.cont [13/16] 0.0, 128
        %1289 = vxpose.xlu0.b32.cont [14/16] 0.0, 128
        %1290 = vxpose.xlu0.b32.cont [15/16] 0.0, 128
        %1291 = vxpose.xlu0.b32.end [16/16] 0.0, 128
        %v1292 = vpop.trf.xlu0
        %v1293 = vpop.trf.xlu0
        %v1294 = vpop.trf.xlu0
        %v1295 = vpop.trf.xlu0
        %v1296 = vpop.trf.xlu0
        %v1297 = vpop.trf.xlu0
        %v1298 = vpop.trf.xlu0
        %v1299 = vpop.trf.xlu0
        %v1300 = vpop.trf.xlu0
        %v1301 = vpop.trf.xlu0
        %v1302 = vpop.trf.xlu0
        %v1303 = vpop.trf.xlu0
        %v1304 = vpop.trf.xlu0
        %v1305 = vpop.trf.xlu0
        %v1306 = vpop.trf.xlu0
        %v1307 = vpop.trf.xlu0
        %v1309 = vsel %vm636, %v1292, 0
        %v1312 = vsel %vm636, %v1252, 0
        %v1315 = vsel %vm636, %v1253, 0
        %v1318 = vsel %vm636, %v1254, 0
        %v1321 = vsel %vm636, %v1255, 0
        %v1324 = vsel %vm636, %v1256, 0
        %v1327 = vsel %vm636, %v1257, 0
        %v1330 = vsel %vm636, %v1258, 0
        %v1333 = vsel %vm636, %v1259, 0
        %v1336 = vsel %vm636, %v1260, 0
        %v1339 = vsel %vm636, %v1261, 0
        %v1342 = vsel %vm636, %v1262, 0
        %v1345 = vsel %vm636, %v1263, 0
        %v1348 = vsel %vm636, %v1264, 0
        %v1351 = vsel %vm636, %v1265, 0
        %v1354 = vsel %vm636, %v1266, 0
        %v1357 = vsel %vm636, %v1267, 0
        %1359 = vmatprep.subr.mxu0 0.0
        %1360 = vmatpush1.xpose.msra.mxu0 %v1357
        %1361 = vmatprep.subr.mxu0 0.0
        %1362 = vmatpush1.xpose.msra.mxu0 %v1354
        %1363 = vmatprep.subr.mxu0 0.0
        %1364 = vmatpush1.xpose.msra.mxu0 %v1351
        %1365 = vmatprep.subr.mxu0 0.0
        %1366 = vmatpush1.xpose.msra.mxu0 %v1348
        %1367 = vmatprep.subr.mxu0 0.0
        %1368 = vmatpush1.xpose.msra.mxu0 %v1345
        %1369 = vmatprep.subr.mxu0 0.0
        %1370 = vmatpush1.xpose.msra.mxu0 %v1342
        %1371 = vmatprep.subr.mxu0 0.0
        %1372 = vmatpush1.xpose.msra.mxu0 %v1339
        %1373 = vmatprep.subr.mxu0 0.0
        %1374 = vmatpush1.xpose.msra.mxu0 %v1336
        %1375 = vmatprep.subr.mxu0 0.0
        %1376 = vmatpush1.xpose.msra.mxu0 %v1333
        %1377 = vmatprep.subr.mxu0 0.0
        %1378 = vmatpush1.xpose.msra.mxu0 %v1330
        %1379 = vmatprep.subr.mxu0 0.0
        %1380 = vmatpush1.xpose.msra.mxu0 %v1327
        %1381 = vmatprep.subr.mxu0 0.0
        %1382 = vmatpush1.xpose.msra.mxu0 %v1324
        %1383 = vmatprep.subr.mxu0 0.0
        %1384 = vmatpush1.xpose.msra.mxu0 %v1321
        %1385 = vmatprep.subr.mxu0 0.0
        %1386 = vmatpush1.xpose.msra.mxu0 %v1318
        %1387 = vmatprep.subr.mxu0 0.0
        %1388 = vmatpush1.xpose.msra.mxu0 %v1315
        %1389 = vmatprep.subr.mxu0 0.0
        %1390 = vmatpush1.xpose.msra.mxu0 %v1312
        %1391 = vmatprep.subr.mxu0 0.0
        %1392 = vmatpush2.xpose.msra.mxu0 0.0
        %1393 = vmatprep.subr.mxu0 0.0
        %1394 = vmatpush2.xpose.msra.mxu0 0.0
        %1395 = vmatprep.subr.mxu0 0.0
        %1396 = vmatpush2.xpose.msra.mxu0 0.0
        %1397 = vmatprep.subr.mxu0 0.0
        %1398 = vmatpush2.xpose.msra.mxu0 0.0
        %1399 = vmatprep.subr.mxu0 0.0
        %1400 = vmatpush2.xpose.msra.mxu0 0.0
        %1401 = vmatprep.subr.mxu0 0.0
        %1402 = vmatpush2.xpose.msra.mxu0 0.0
        %1403 = vmatprep.subr.mxu0 0.0
        %1404 = vmatpush2.xpose.msra.mxu0 0.0
        %1405 = vmatprep.subr.mxu0 0.0
        %1406 = vmatpush2.xpose.msra.mxu0 0.0
        %1407 = vmatprep.subr.mxu0 0.0
        %1408 = vmatpush2.xpose.msra.mxu0 0.0
        %1409 = vmatprep.subr.mxu0 0.0
        %1410 = vmatpush2.xpose.msra.mxu0 0.0
        %1411 = vmatprep.subr.mxu0 0.0
        %1412 = vmatpush2.xpose.msra.mxu0 0.0
        %1413 = vmatprep.subr.mxu0 0.0
        %1414 = vmatpush2.xpose.msra.mxu0 0.0
        %1415 = vmatprep.subr.mxu0 0.0
        %1416 = vmatpush2.xpose.msra.mxu0 0.0
        %1417 = vmatprep.subr.mxu0 0.0
        %1418 = vmatpush2.xpose.msra.mxu0 0.0
        %1419 = vmatprep.subr.mxu0 0.0
        %1420 = vmatpush2.xpose.msra.mxu0 0.0
        %1421 = vmatprep.subr.mxu0 0.0
        %1422 = vmatpush2.xpose.msra.mxu0 0.0
        %1423 = vmatprep.mubr.f32.mxu0 0.0
        %1424 = vmatmul.mubr.f32.gmra.mxu0 %v1309
        %v1425 = vpop.f32.mrf.mxu0
        %v1426 = vadd.f32 0.0, %v1425
        %v1427 = vpop.f32.mrf.mxu0
        %1428 = vdwg.mxu0
        %1429 = vxpose.xlu0.b32.start [1/16] %v1268, 128
        %1430 = vxpose.xlu0.b32.cont [2/16] %v1269, 128
        %1431 = vxpose.xlu0.b32.cont [3/16] %v1270, 128
        %1432 = vxpose.xlu0.b32.cont [4/16] %v1271, 128
        %1433 = vxpose.xlu0.b32.cont [5/16] 0.0, 128
        %1434 = vxpose.xlu0.b32.cont [6/16] 0.0, 128
        %1435 = vxpose.xlu0.b32.cont [7/16] 0.0, 128
        %1436 = vxpose.xlu0.b32.cont [8/16] 0.0, 128
        %1437 = vxpose.xlu0.b32.cont [9/16] 0.0, 128
        %1438 = vxpose.xlu0.b32.cont [10/16] 0.0, 128
        %1439 = vxpose.xlu0.b32.cont [11/16] 0.0, 128
        %1440 = vxpose.xlu0.b32.cont [12/16] 0.0, 128
        %1441 = vxpose.xlu0.b32.cont [13/16] 0.0, 128
        %1442 = vxpose.xlu0.b32.cont [14/16] 0.0, 128
        %1443 = vxpose.xlu0.b32.cont [15/16] 0.0, 128
        %1444 = vxpose.xlu0.b32.end [16/16] 0.0, 128
        %v1445 = vpop.trf.xlu0
        %v1446 = vpop.trf.xlu0
        %v1447 = vpop.trf.xlu0
        %v1448 = vpop.trf.xlu0
        %v1449 = vpop.trf.xlu0
        %v1450 = vpop.trf.xlu0
        %v1451 = vpop.trf.xlu0
        %v1452 = vpop.trf.xlu0
        %v1453 = vpop.trf.xlu0
        %v1454 = vpop.trf.xlu0
        %v1455 = vpop.trf.xlu0
        %v1456 = vpop.trf.xlu0
        %v1457 = vpop.trf.xlu0
        %v1458 = vpop.trf.xlu0
        %v1459 = vpop.trf.xlu0
        %v1460 = vpop.trf.xlu0
        %v1462 = vsel %vm636, %v1445, 0
        %v1465 = vsel %vm636, %v1108, 0
        %v1468 = vsel %vm636, %v1109, 0
        %v1471 = vsel %vm636, %v1110, 0
        %v1474 = vsel %vm636, %v1111, 0
        %v1477 = vsel %vm636, %v1112, 0
        %v1480 = vsel %vm636, %v1113, 0
        %v1483 = vsel %vm636, %v1114, 0
        %v1486 = vsel %vm636, %v1115, 0
        %v1489 = vsel %vm636, %v1116, 0
        %v1492 = vsel %vm636, %v1117, 0
        %v1495 = vsel %vm636, %v1118, 0
        %v1498 = vsel %vm636, %v1119, 0
        %v1501 = vsel %vm636, %v1120, 0
        %v1504 = vsel %vm636, %v1121, 0
        %v1507 = vsel %vm636, %v1122, 0
        %v1510 = vsel %vm636, %v1123, 0
        %1512 = vmatprep.subr.mxu0 0.0
        %1513 = vmatpush1.xpose.msra.mxu0 %v1510
        %1514 = vmatprep.subr.mxu0 0.0
        %1515 = vmatpush1.xpose.msra.mxu0 %v1507
        %1516 = vmatprep.subr.mxu0 0.0
        %1517 = vmatpush1.xpose.msra.mxu0 %v1504
        %1518 = vmatprep.subr.mxu0 0.0
        %1519 = vmatpush1.xpose.msra.mxu0 %v1501
        %1520 = vmatprep.subr.mxu0 0.0
        %1521 = vmatpush1.xpose.msra.mxu0 %v1498
        %1522 = vmatprep.subr.mxu0 0.0
        %1523 = vmatpush1.xpose.msra.mxu0 %v1495
        %1524 = vmatprep.subr.mxu0 0.0
        %1525 = vmatpush1.xpose.msra.mxu0 %v1492
        %1526 = vmatprep.subr.mxu0 0.0
        %1527 = vmatpush1.xpose.msra.mxu0 %v1489
        %1528 = vmatprep.subr.mxu0 0.0
        %1529 = vmatpush1.xpose.msra.mxu0 %v1486
        %1530 = vmatprep.subr.mxu0 0.0
        %1531 = vmatpush1.xpose.msra.mxu0 %v1483
        %1532 = vmatprep.subr.mxu0 0.0
        %1533 = vmatpush1.xpose.msra.mxu0 %v1480
        %1534 = vmatprep.subr.mxu0 0.0
        %1535 = vmatpush1.xpose.msra.mxu0 %v1477
        %1536 = vmatprep.subr.mxu0 0.0
        %1537 = vmatpush1.xpose.msra.mxu0 %v1474
        %1538 = vmatprep.subr.mxu0 0.0
        %1539 = vmatpush1.xpose.msra.mxu0 %v1471
        %1540 = vmatprep.subr.mxu0 0.0
        %1541 = vmatpush1.xpose.msra.mxu0 %v1468
        %1542 = vmatprep.subr.mxu0 0.0
        %1543 = vmatpush1.xpose.msra.mxu0 %v1465
        %1544 = vmatprep.subr.mxu0 0.0
        %1545 = vmatpush2.xpose.msra.mxu0 0.0
        %1546 = vmatprep.subr.mxu0 0.0
        %1547 = vmatpush2.xpose.msra.mxu0 0.0
        %1548 = vmatprep.subr.mxu0 0.0
        %1549 = vmatpush2.xpose.msra.mxu0 0.0
        %1550 = vmatprep.subr.mxu0 0.0
        %1551 = vmatpush2.xpose.msra.mxu0 0.0
        %1552 = vmatprep.subr.mxu0 0.0
        %1553 = vmatpush2.xpose.msra.mxu0 0.0
        %1554 = vmatprep.subr.mxu0 0.0
        %1555 = vmatpush2.xpose.msra.mxu0 0.0
        %1556 = vmatprep.subr.mxu0 0.0
        %1557 = vmatpush2.xpose.msra.mxu0 0.0
        %1558 = vmatprep.subr.mxu0 0.0
        %1559 = vmatpush2.xpose.msra.mxu0 0.0
        %1560 = vmatprep.subr.mxu0 0.0
        %1561 = vmatpush2.xpose.msra.mxu0 0.0
        %1562 = vmatprep.subr.mxu0 0.0
        %1563 = vmatpush2.xpose.msra.mxu0 0.0
        %1564 = vmatprep.subr.mxu0 0.0
        %1565 = vmatpush2.xpose.msra.mxu0 0.0
        %1566 = vmatprep.subr.mxu0 0.0
        %1567 = vmatpush2.xpose.msra.mxu0 0.0
        %1568 = vmatprep.subr.mxu0 0.0
        %1569 = vmatpush2.xpose.msra.mxu0 0.0
        %1570 = vmatprep.subr.mxu0 0.0
        %1571 = vmatpush2.xpose.msra.mxu0 0.0
        %1572 = vmatprep.subr.mxu0 0.0
        %1573 = vmatpush2.xpose.msra.mxu0 0.0
        %1574 = vmatprep.subr.mxu0 0.0
        %1575 = vmatpush2.xpose.msra.mxu0 0.0
        %1576 = vmatprep.mubr.f32.mxu0 0.0
        %1577 = vmatmul.mubr.f32.gmra.mxu0 %v1462
        %v1578 = vpop.f32.mrf.mxu0
        %v1579 = vadd.f32 %v1426, %v1578
        %v1580 = vpop.f32.mrf.mxu0
        %1581 = vdwg.mxu0
        %v1582 = vadd.f32 %v1579, %v608
        %v1583 = vld [vmem:[#allocation3] sm:$0xf]
        %v1586 = vunpack.c.l.s4 1966171168
        %v1587 = vunpack.c.0.s8 %v1586
        %v1588 = vlaneseq
        %v1589 = vshrl.u32 %v1588, 7
        %v1590 = vsub.s32 %v1587, %v1589
        %v1591 = vrot.slane %v600, %v1590
        %v1592 = vcombine.high %v1591, %v1591
        %v1594 = vunpack.c.l.s4 1966171168
        %v1595 = vunpack.c.0.s8 %v1594
        %v1596 = vlaneseq
        %v1597 = vshrl.u32 %v1596, 7
        %v1598 = vsub.s32 %v1595, %v1597
        %v1599 = vrot.slane %v1591, %v1598
        %v1601 = vunpack.c.l.s4 1966171168
        %v1602 = vunpack.c.0.s8 %v1601
        %v1603 = vlaneseq
        %v1604 = vshrl.u32 %v1603, 7
        %v1605 = vsub.s32 %v1602, %v1604
        %v1606 = vrot.slane %v1592, %v1605
        %v1607 = vcombine.high %v1599, %v1599
        %v1608 = vcombine.high %v1606, %v1606
        %v1609 = vlaneseq
        %v1610 = vshrl.u32 %v1609, 7
        %v1611 = vsub.s32 0, %v1610
        %v1612 = vrot.slane %v1599, %v1611
        %v1613 = vlaneseq
        %v1614 = vshrl.u32 %v1613, 7
        %v1615 = vsub.s32 0, %v1614
        %v1616 = vrot.slane %v1606, %v1615
        %v1617 = vlaneseq
        %v1618 = vshrl.u32 %v1617, 7
        %v1619 = vsub.s32 0, %v1618
        %v1620 = vrot.slane %v1607, %v1619
        %v1621 = vlaneseq
        %v1622 = vshrl.u32 %v1621, 7
        %v1623 = vsub.s32 0, %v1622
        %v1624 = vrot.slane %v1608, %v1623
        %v1629 = vadd.f32 %v1582, %v1612
        %v1630 = vadd.f32 %v1582, %v1616
        %v1631 = vadd.f32 %v1582, %v1620
        %v1632 = vadd.f32 %v1582, %v1624
        %v1633 = vsel %vm601, %v1629, -inf
        %1634 = vmax.xlane.f32.xlu0 %v1633
        %v1635 = vpop.xlane.xlu0 %1634
        %v1636 = vsel %vm601, %v1630, -inf
        %1637 = vmax.xlane.f32.xlu0 %v1636
        %v1638 = vpop.xlane.xlu0 %1637
        %v1639 = vsel %vm601, %v1631, -inf
        %1640 = vmax.xlane.f32.xlu0 %v1639
        %v1641 = vpop.xlane.xlu0 %1640
        %v1642 = vsel %vm601, %v1632, -inf
        %1643 = vmax.xlane.f32.xlu0 %v1642
        %v1644 = vpop.xlane.xlu0 %1643
        %v1649 = vlaneseq
        %v1650 = vand.u32 %v1649, 127
        %v1651 = vlaneseq
        %v1652 = vshrl.u32 %v1651, 7
        %v1653 = vsub.s32 %v1650, %v1652
        %v1654 = vrot.slane %v1635, %v1653
        %v1655 = vlaneseq
        %v1656 = vshrl.u32 %v1655, 7
        %v1657 = vsub.s32 %v1650, %v1656
        %v1658 = vrot.slane %v1638, %v1657
        %v1659 = vlaneseq
        %v1660 = vshrl.u32 %v1659, 7
        %v1661 = vsub.s32 %v1650, %v1660
        %v1662 = vrot.slane %v1641, %v1661
        %v1663 = vlaneseq
        %v1664 = vshrl.u32 %v1663, 7
        %v1665 = vsub.s32 %v1650, %v1664
        %v1666 = vrot.slane %v1644, %v1665
        %vm1667 = vcmask 1041409
        %v1668 = vsel %vm1667, %v1658, %v1654
        %vm1669 = vcmask 1042434
        %v1670 = vsel %vm1669, %v1662, %v1668
        %vm1671 = vcmask 1043459
        %v1672 = vsel %vm1671, %v1666, %v1670
        %v1674 = vmax.f32 %v1583, %v1672
        %v1675 = vsub.f32 %v1583, %v1674
        %v1676 = vmul.f32 %v1675, 1.442695
        %v1677 = vpow.pop %v1676
        %1678 = vxpose.xlu0.b32.start [1/16] %v1674, 128
        %1679 = vxpose.xlu0.b32.cont [2/16] 0.0, 128
        %1680 = vxpose.xlu0.b32.cont [3/16] 0.0, 128
        %1681 = vxpose.xlu0.b32.cont [4/16] 0.0, 128
        %1682 = vxpose.xlu0.b32.cont [5/16] 0.0, 128
        %1683 = vxpose.xlu0.b32.cont [6/16] 0.0, 128
        %1684 = vxpose.xlu0.b32.cont [7/16] 0.0, 128
        %1685 = vxpose.xlu0.b32.cont [8/16] 0.0, 128
        %1686 = vxpose.xlu0.b32.cont [9/16] 0.0, 128
        %1687 = vxpose.xlu0.b32.cont [10/16] 0.0, 128
        %1688 = vxpose.xlu0.b32.cont [11/16] 0.0, 128
        %1689 = vxpose.xlu0.b32.cont [12/16] 0.0, 128
        %1690 = vxpose.xlu0.b32.cont [13/16] 0.0, 128
        %1691 = vxpose.xlu0.b32.cont [14/16] 0.0, 128
        %1692 = vxpose.xlu0.b32.cont [15/16] 0.0, 128
        %1693 = vxpose.xlu0.b32.end [16/16] 0.0, 128
        %v1694 = vpop.trf.xlu0
        %v1695 = vpop.trf.xlu0
        %v1696 = vpop.trf.xlu0
        %v1697 = vpop.trf.xlu0
        %v1698 = vpop.trf.xlu0
        %v1699 = vpop.trf.xlu0
        %v1700 = vpop.trf.xlu0
        %v1701 = vpop.trf.xlu0
        %v1702 = vpop.trf.xlu0
        %v1703 = vpop.trf.xlu0
        %v1704 = vpop.trf.xlu0
        %v1705 = vpop.trf.xlu0
        %v1706 = vpop.trf.xlu0
        %v1707 = vpop.trf.xlu0
        %v1708 = vpop.trf.xlu0
        %v1709 = vpop.trf.xlu0
        %v1711 = vsel %vm863, %v1694, 0
        %v1714 = vsel %vm601, %v598, 0
        %1716 = vmatprep.subr.mxu0 0.0
        %1717 = vmatpush1.msra.mxu0 0.0
        %1718 = vmatprep.subr.mxu0 0.0
        %1719 = vmatpush1.msra.mxu0 0.0
        %1720 = vmatprep.subr.mxu0 0.0
        %1721 = vmatpush1.msra.mxu0 0.0
        %1722 = vmatprep.subr.mxu0 0.0
        %1723 = vmatpush1.msra.mxu0 0.0
        %1724 = vmatprep.subr.mxu0 0.0
        %1725 = vmatpush1.msra.mxu0 0.0
        %1726 = vmatprep.subr.mxu0 0.0
        %1727 = vmatpush1.msra.mxu0 0.0
        %1728 = vmatprep.subr.mxu0 0.0
        %1729 = vmatpush1.msra.mxu0 0.0
        %1730 = vmatprep.subr.mxu0 0.0
        %1731 = vmatpush1.msra.mxu0 0.0
        %1732 = vmatprep.subr.mxu0 0.0
        %1733 = vmatpush1.msra.mxu0 0.0
        %1734 = vmatprep.subr.mxu0 0.0
        %1735 = vmatpush1.msra.mxu0 0.0
        %1736 = vmatprep.subr.mxu0 0.0
        %1737 = vmatpush1.msra.mxu0 0.0
        %1738 = vmatprep.subr.mxu0 0.0
        %1739 = vmatpush1.msra.mxu0 0.0
        %1740 = vmatprep.subr.mxu0 0.0
        %1741 = vmatpush1.msra.mxu0 0.0
        %1742 = vmatprep.subr.mxu0 0.0
        %1743 = vmatpush1.msra.mxu0 0.0
        %1744 = vmatprep.subr.mxu0 0.0
        %1745 = vmatpush1.msra.mxu0 0.0
        %1746 = vmatprep.subr.mxu0 0.0
        %1747 = vmatpush1.msra.mxu0 %v1714
        %1748 = vmatprep.subr.mxu0 0.0
        %1749 = vmatpush2.msra.mxu0 0.0
        %1750 = vmatprep.subr.mxu0 0.0
        %1751 = vmatpush2.msra.mxu0 0.0
        %1752 = vmatprep.subr.mxu0 0.0
        %1753 = vmatpush2.msra.mxu0 0.0
        %1754 = vmatprep.subr.mxu0 0.0
        %1755 = vmatpush2.msra.mxu0 0.0
        %1756 = vmatprep.subr.mxu0 0.0
        %1757 = vmatpush2.msra.mxu0 0.0
        %1758 = vmatprep.subr.mxu0 0.0
        %1759 = vmatpush2.msra.mxu0 0.0
        %1760 = vmatprep.subr.mxu0 0.0
        %1761 = vmatpush2.msra.mxu0 0.0
        %1762 = vmatprep.subr.mxu0 0.0
        %1763 = vmatpush2.msra.mxu0 0.0
        %1764 = vmatprep.subr.mxu0 0.0
        %1765 = vmatpush2.msra.mxu0 0.0
        %1766 = vmatprep.subr.mxu0 0.0
        %1767 = vmatpush2.msra.mxu0 0.0
        %1768 = vmatprep.subr.mxu0 0.0
        %1769 = vmatpush2.msra.mxu0 0.0
        %1770 = vmatprep.subr.mxu0 0.0
        %1771 = vmatpush2.msra.mxu0 0.0
        %1772 = vmatprep.subr.mxu0 0.0
        %1773 = vmatpush2.msra.mxu0 0.0
        %1774 = vmatprep.subr.mxu0 0.0
        %1775 = vmatpush2.msra.mxu0 0.0
        %1776 = vmatprep.subr.mxu0 0.0
        %1777 = vmatpush2.msra.mxu0 0.0
        %1778 = vmatprep.subr.mxu0 0.0
        %1779 = vmatpush2.msra.mxu0 0.0
        %1780 = vmatprep.mubr.f32.mxu0 0.0
        %1781 = vmatmul.mubr.f32.gmra.mxu0 %v1711
        %v1782 = vpop.f32.mrf.mxu0
        %v1783 = vadd.f32 0.0, %v1782
        %v1784 = vpop.f32.mrf.mxu0
        %1785 = vdwg.mxu0
        %v1786 = vsub.f32 %v1582, %v1783
        %v1787 = vmul.f32 %v1786, 1.442695
        %v1788 = vpow.pop %v1787
        %1789 = vmatprep.subr.mxu0 0.0
        %1790 = vmatpush1.xpose.msra.mxu0 0.0
        %1791 = vmatprep.subr.mxu0 0.0
        %1792 = vmatpush1.xpose.msra.mxu0 0.0
        %1793 = vmatprep.subr.mxu0 0.0
        %1794 = vmatpush1.xpose.msra.mxu0 0.0
        %1795 = vmatprep.subr.mxu0 0.0
        %1796 = vmatpush1.xpose.msra.mxu0 0.0
        %1797 = vmatprep.subr.mxu0 0.0
        %1798 = vmatpush1.xpose.msra.mxu0 0.0
        %1799 = vmatprep.subr.mxu0 0.0
        %1800 = vmatpush1.xpose.msra.mxu0 0.0
        %1801 = vmatprep.subr.mxu0 0.0
        %1802 = vmatpush1.xpose.msra.mxu0 0.0
        %1803 = vmatprep.subr.mxu0 0.0
        %1804 = vmatpush1.xpose.msra.mxu0 0.0
        %1805 = vmatprep.subr.mxu0 0.0
        %1806 = vmatpush1.xpose.msra.mxu0 0.0
        %1807 = vmatprep.subr.mxu0 0.0
        %1808 = vmatpush1.xpose.msra.mxu0 0.0
        %1809 = vmatprep.subr.mxu0 0.0
        %1810 = vmatpush1.xpose.msra.mxu0 0.0
        %1811 = vmatprep.subr.mxu0 0.0
        %1812 = vmatpush1.xpose.msra.mxu0 0.0
        %1813 = vmatprep.subr.mxu0 0.0
        %1814 = vmatpush1.xpose.msra.mxu0 0.0
        %1815 = vmatprep.subr.mxu0 0.0
        %1816 = vmatpush1.xpose.msra.mxu0 0.0
        %1817 = vmatprep.subr.mxu0 0.0
        %1818 = vmatpush1.xpose.msra.mxu0 0.0
        %1819 = vmatprep.subr.mxu0 0.0
        %1820 = vmatpush1.xpose.msra.mxu0 %v1788
        %1821 = vmatprep.subr.mxu0 0.0
        %1822 = vmatpush2.xpose.msra.mxu0 0.0
        %1823 = vmatprep.subr.mxu0 0.0
        %1824 = vmatpush2.xpose.msra.mxu0 0.0
        %1825 = vmatprep.subr.mxu0 0.0
        %1826 = vmatpush2.xpose.msra.mxu0 0.0
        %1827 = vmatprep.subr.mxu0 0.0
        %1828 = vmatpush2.xpose.msra.mxu0 0.0
        %1829 = vmatprep.subr.mxu0 0.0
        %1830 = vmatpush2.xpose.msra.mxu0 0.0
        %1831 = vmatprep.subr.mxu0 0.0
        %1832 = vmatpush2.xpose.msra.mxu0 0.0
        %1833 = vmatprep.subr.mxu0 0.0
        %1834 = vmatpush2.xpose.msra.mxu0 0.0
        %1835 = vmatprep.subr.mxu0 0.0
        %1836 = vmatpush2.xpose.msra.mxu0 0.0
        %1837 = vmatprep.subr.mxu0 0.0
        %1838 = vmatpush2.xpose.msra.mxu0 0.0
        %1839 = vmatprep.subr.mxu0 0.0
        %1840 = vmatpush2.xpose.msra.mxu0 0.0
        %1841 = vmatprep.subr.mxu0 0.0
        %1842 = vmatpush2.xpose.msra.mxu0 0.0
        %1843 = vmatprep.subr.mxu0 0.0
        %1844 = vmatpush2.xpose.msra.mxu0 0.0
        %1845 = vmatprep.subr.mxu0 0.0
        %1846 = vmatpush2.xpose.msra.mxu0 0.0
        %1847 = vmatprep.subr.mxu0 0.0
        %1848 = vmatpush2.xpose.msra.mxu0 0.0
        %1849 = vmatprep.subr.mxu0 0.0
        %1850 = vmatpush2.xpose.msra.mxu0 0.0
        %1851 = vmatprep.subr.mxu0 0.0
        %1852 = vmatpush2.xpose.msra.mxu0 0.0
        %1853 = vmatprep.mubr.f32.mxu0 0.0
        %1854 = vmatmul.mubr.f32.gmra.mxu0 %v598
        %v1855 = vpop.f32.mrf.mxu0
        %v1856 = vadd.f32 0.0, %v1855
        %v1857 = vpop.f32.mrf.mxu0
        %1858 = vdwg.mxu0
        %v1859 = vld [vmem:[#allocation4] sm:$0xf]
        %v1860 = vmul.f32 %v1677, %v1859
        %v1861 = vadd.f32 %v1860, %v1856
        %vm1862 = vcmask 27648
        %1863 = vst.msk [vmem:[#allocation4] sm:$0xf] %vm1862, %v1861
        %v1864 = vld [vmem:[%s13] sm:$0xff]
        %v1865 = vld [vmem:[%s13 + $0x8] sm:$0xff]
        %v1866 = vld [vmem:[%s13 + $0x10] sm:$0xff]
        %v1867 = vld [vmem:[%s13 + $0x18] sm:$0xff]
        %1868 = vxpose.xlu0.b32.start [1/16] %v1788, 128
        %1869 = vxpose.xlu0.b32.cont [2/16] 0.0, 128
        %1870 = vxpose.xlu0.b32.cont [3/16] 0.0, 128
        %1871 = vxpose.xlu0.b32.cont [4/16] 0.0, 128
        %1872 = vxpose.xlu0.b32.cont [5/16] 0.0, 128
        %1873 = vxpose.xlu0.b32.cont [6/16] 0.0, 128
        %1874 = vxpose.xlu0.b32.cont [7/16] 0.0, 128
        %1875 = vxpose.xlu0.b32.cont [8/16] 0.0, 128
        %1876 = vxpose.xlu0.b32.cont [9/16] 0.0, 128
        %1877 = vxpose.xlu0.b32.cont [10/16] 0.0, 128
        %1878 = vxpose.xlu0.b32.cont [11/16] 0.0, 128
        %1879 = vxpose.xlu0.b32.cont [12/16] 0.0, 128
        %1880 = vxpose.xlu0.b32.cont [13/16] 0.0, 128
        %1881 = vxpose.xlu0.b32.cont [14/16] 0.0, 128
        %1882 = vxpose.xlu0.b32.cont [15/16] 0.0, 128
        %1883 = vxpose.xlu0.b32.end [16/16] 0.0, 128
        %v1884 = vpop.trf.xlu0
        %v1885 = vpop.trf.xlu0
        %v1886 = vpop.trf.xlu0
        %v1887 = vpop.trf.xlu0
        %v1888 = vpop.trf.xlu0
        %v1889 = vpop.trf.xlu0
        %v1890 = vpop.trf.xlu0
        %v1891 = vpop.trf.xlu0
        %v1892 = vpop.trf.xlu0
        %v1893 = vpop.trf.xlu0
        %v1894 = vpop.trf.xlu0
        %v1895 = vpop.trf.xlu0
        %v1896 = vpop.trf.xlu0
        %v1897 = vpop.trf.xlu0
        %v1898 = vpop.trf.xlu0
        %v1899 = vpop.trf.xlu0
        %v1901 = vsel %vm863, %v1884, 0
        %v1904 = vsel %vm863, %v1885, 0
        %v1907 = vsel %vm863, %v1886, 0
        %v1910 = vsel %vm863, %v1887, 0
        %v1913 = vsel %vm863, %v1888, 0
        %v1916 = vsel %vm863, %v1889, 0
        %v1919 = vsel %vm863, %v1890, 0
        %v1922 = vsel %vm863, %v1891, 0
        %v1925 = vsel %vm863, %v1892, 0
        %v1928 = vsel %vm863, %v1893, 0
        %v1931 = vsel %vm863, %v1894, 0
        %v1934 = vsel %vm863, %v1895, 0
        %v1937 = vsel %vm863, %v1896, 0
        %v1940 = vsel %vm863, %v1897, 0
        %v1943 = vsel %vm863, %v1898, 0
        %v1946 = vsel %vm863, %v1899, 0
        %v1949 = vsel %vm863, %v1864, 0
        %v1952 = vsel %vm863, %v1865, 0
        %v1955 = vsel %vm863, %v1866, 0
        %v1958 = vsel %vm863, %v1867, 0
        %1960 = vmatprep.subr.mxu0 0.0
        %1961 = vmatpush1.xpose.msra.mxu0 0.0
        %1962 = vmatprep.subr.mxu0 0.0
        %1963 = vmatpush1.xpose.msra.mxu0 0.0
        %1964 = vmatprep.subr.mxu0 0.0
        %1965 = vmatpush1.xpose.msra.mxu0 0.0
        %1966 = vmatprep.subr.mxu0 0.0
        %1967 = vmatpush1.xpose.msra.mxu0 0.0
        %1968 = vmatprep.subr.mxu0 0.0
        %1969 = vmatpush1.xpose.msra.mxu0 0.0
        %1970 = vmatprep.subr.mxu0 0.0
        %1971 = vmatpush1.xpose.msra.mxu0 0.0
        %1972 = vmatprep.subr.mxu0 0.0
        %1973 = vmatpush1.xpose.msra.mxu0 0.0
        %1974 = vmatprep.subr.mxu0 0.0
        %1975 = vmatpush1.xpose.msra.mxu0 0.0
        %1976 = vmatprep.subr.mxu0 0.0
        %1977 = vmatpush1.xpose.msra.mxu0 0.0
        %1978 = vmatprep.subr.mxu0 0.0
        %1979 = vmatpush1.xpose.msra.mxu0 0.0
        %1980 = vmatprep.subr.mxu0 0.0
        %1981 = vmatpush1.xpose.msra.mxu0 0.0
        %1982 = vmatprep.subr.mxu0 0.0
        %1983 = vmatpush1.xpose.msra.mxu0 0.0
        %1984 = vmatprep.subr.mxu0 0.0
        %1985 = vmatpush1.xpose.msra.mxu0 %v1958
        %1986 = vmatprep.subr.mxu0 0.0
        %1987 = vmatpush1.xpose.msra.mxu0 %v1955
        %1988 = vmatprep.subr.mxu0 0.0
        %1989 = vmatpush1.xpose.msra.mxu0 %v1952
        %1990 = vmatprep.subr.mxu0 0.0
        %1991 = vmatpush1.xpose.msra.mxu0 %v1949
        %1992 = vmatprep.subr.mxu0 0.0
        %1993 = vmatpush2.xpose.msra.mxu0 0.0
        %1994 = vmatprep.subr.mxu0 0.0
        %1995 = vmatpush2.xpose.msra.mxu0 0.0
        %1996 = vmatprep.subr.mxu0 0.0
        %1997 = vmatpush2.xpose.msra.mxu0 0.0
        %1998 = vmatprep.subr.mxu0 0.0
        %1999 = vmatpush2.xpose.msra.mxu0 0.0
        %2000 = vmatprep.subr.mxu0 0.0
        %2001 = vmatpush2.xpose.msra.mxu0 0.0
        %2002 = vmatprep.subr.mxu0 0.0
        %2003 = vmatpush2.xpose.msra.mxu0 0.0
        %2004 = vmatprep.subr.mxu0 0.0
        %2005 = vmatpush2.xpose.msra.mxu0 0.0
        %2006 = vmatprep.subr.mxu0 0.0
        %2007 = vmatpush2.xpose.msra.mxu0 0.0
        %2008 = vmatprep.subr.mxu0 0.0
        %2009 = vmatpush2.xpose.msra.mxu0 0.0
        %2010 = vmatprep.subr.mxu0 0.0
        %2011 = vmatpush2.xpose.msra.mxu0 0.0
        %2012 = vmatprep.subr.mxu0 0.0
        %2013 = vmatpush2.xpose.msra.mxu0 0.0
        %2014 = vmatprep.subr.mxu0 0.0
        %2015 = vmatpush2.xpose.msra.mxu0 0.0
        %2016 = vmatprep.subr.mxu0 0.0
        %2017 = vmatpush2.xpose.msra.mxu0 0.0
        %2018 = vmatprep.subr.mxu0 0.0
        %2019 = vmatpush2.xpose.msra.mxu0 0.0
        %2020 = vmatprep.subr.mxu0 0.0
        %2021 = vmatpush2.xpose.msra.mxu0 0.0
        %2022 = vmatprep.subr.mxu0 0.0
        %2023 = vmatpush2.xpose.msra.mxu0 0.0
        %2024 = vmatprep.mubr.f32.mxu0 0.0
        %2025 = vmatmul.mubr.f32.gmra.mxu0 %v1901
        %v2026 = vpop.f32.mrf.mxu0
        %v2027 = vadd.f32 0.0, %v2026
        %v2028 = vpop.f32.mrf.mxu0
        %2029 = vmatprep.mubr.f32.mxu0 0.0
        %2030 = vmatmul.mubr.f32.gmra.mxu0 %v1904
        %v2031 = vpop.f32.mrf.mxu0
        %v2032 = vadd.f32 0.0, %v2031
        %v2033 = vpop.f32.mrf.mxu0
        %2034 = vmatprep.mubr.f32.mxu0 0.0
        %2035 = vmatmul.mubr.f32.gmra.mxu0 %v1907
        %v2036 = vpop.f32.mrf.mxu0
        %v2037 = vadd.f32 0.0, %v2036
        %v2038 = vpop.f32.mrf.mxu0
        %2039 = vmatprep.mubr.f32.mxu0 0.0
        %2040 = vmatmul.mubr.f32.gmra.mxu0 %v1910
        %v2041 = vpop.f32.mrf.mxu0
        %v2042 = vadd.f32 0.0, %v2041
        %v2043 = vpop.f32.mrf.mxu0
        %2044 = vmatprep.mubr.f32.mxu0 0.0
        %2045 = vmatmul.mubr.f32.gmra.mxu0 %v1913
        %v2046 = vpop.f32.mrf.mxu0
        %v2047 = vadd.f32 0.0, %v2046
        %v2048 = vpop.f32.mrf.mxu0
        %2049 = vmatprep.mubr.f32.mxu0 0.0
        %2050 = vmatmul.mubr.f32.gmra.mxu0 %v1916
        %v2051 = vpop.f32.mrf.mxu0
        %v2052 = vadd.f32 0.0, %v2051
        %v2053 = vpop.f32.mrf.mxu0
        %2054 = vmatprep.mubr.f32.mxu0 0.0
        %2055 = vmatmul.mubr.f32.gmra.mxu0 %v1919
        %v2056 = vpop.f32.mrf.mxu0
        %v2057 = vadd.f32 0.0, %v2056
        %v2058 = vpop.f32.mrf.mxu0
        %2059 = vmatprep.mubr.f32.mxu0 0.0
        %2060 = vmatmul.mubr.f32.gmra.mxu0 %v1922
        %v2061 = vpop.f32.mrf.mxu0
        %v2062 = vadd.f32 0.0, %v2061
        %v2063 = vpop.f32.mrf.mxu0
        %2064 = vmatprep.mubr.f32.mxu0 0.0
        %2065 = vmatmul.mubr.f32.gmra.mxu0 %v1925
        %v2066 = vpop.f32.mrf.mxu0
        %v2067 = vadd.f32 0.0, %v2066
        %v2068 = vpop.f32.mrf.mxu0
        %2069 = vmatprep.mubr.f32.mxu0 0.0
        %2070 = vmatmul.mubr.f32.gmra.mxu0 %v1928
        %v2071 = vpop.f32.mrf.mxu0
        %v2072 = vadd.f32 0.0, %v2071
        %v2073 = vpop.f32.mrf.mxu0
        %2074 = vmatprep.mubr.f32.mxu0 0.0
        %2075 = vmatmul.mubr.f32.gmra.mxu0 %v1931
        %v2076 = vpop.f32.mrf.mxu0
        %v2077 = vadd.f32 0.0, %v2076
        %v2078 = vpop.f32.mrf.mxu0
        %2079 = vmatprep.mubr.f32.mxu0 0.0
        %2080 = vmatmul.mubr.f32.gmra.mxu0 %v1934
        %v2081 = vpop.f32.mrf.mxu0
        %v2082 = vadd.f32 0.0, %v2081
        %v2083 = vpop.f32.mrf.mxu0
        %2084 = vmatprep.mubr.f32.mxu0 0.0
        %2085 = vmatmul.mubr.f32.gmra.mxu0 %v1937
        %v2086 = vpop.f32.mrf.mxu0
        %v2087 = vadd.f32 0.0, %v2086
        %v2088 = vpop.f32.mrf.mxu0
        %2089 = vmatprep.mubr.f32.mxu0 0.0
        %2090 = vmatmul.mubr.f32.gmra.mxu0 %v1940
        %v2091 = vpop.f32.mrf.mxu0
        %v2092 = vadd.f32 0.0, %v2091
        %v2093 = vpop.f32.mrf.mxu0
        %2094 = vmatprep.mubr.f32.mxu0 0.0
        %2095 = vmatmul.mubr.f32.gmra.mxu0 %v1943
        %v2096 = vpop.f32.mrf.mxu0
        %v2097 = vadd.f32 0.0, %v2096
        %v2098 = vpop.f32.mrf.mxu0
        %2099 = vmatprep.mubr.f32.mxu0 0.0
        %2100 = vmatmul.mubr.f32.gmra.mxu0 %v1946
        %v2101 = vpop.f32.mrf.mxu0
        %v2102 = vadd.f32 0.0, %v2101
        %v2103 = vpop.f32.mrf.mxu0
        %2104 = vdwg.mxu0
        %v2105 = vmul.f32 %v752, %v2027
        %v2106 = vmul.f32 %v757, %v2032
        %v2107 = vmul.f32 %v762, %v2037
        %v2108 = vmul.f32 %v767, %v2042
        %v2109 = vmul.f32 %v772, %v2047
        %v2110 = vmul.f32 %v777, %v2052
        %v2111 = vmul.f32 %v782, %v2057
        %v2112 = vmul.f32 %v787, %v2062
        %v2113 = vmul.f32 %v792, %v2067
        %v2114 = vmul.f32 %v797, %v2072
        %v2115 = vmul.f32 %v802, %v2077
        %v2116 = vmul.f32 %v807, %v2082
        %v2117 = vmul.f32 %v812, %v2087
        %v2118 = vmul.f32 %v817, %v2092
        %v2119 = vmul.f32 %v822, %v2097
        %v2120 = vmul.f32 %v827, %v2102
        %2121 = vmatprep.subr.mxu0 0.0
        %2122 = vmatpush1.msra.mxu0 %v2120
        %2123 = vmatprep.subr.mxu0 0.0
        %2124 = vmatpush1.msra.mxu0 %v2119
        %2125 = vmatprep.subr.mxu0 0.0
        %2126 = vmatpush1.msra.mxu0 %v2118
        %2127 = vmatprep.subr.mxu0 0.0
        %2128 = vmatpush1.msra.mxu0 %v2117
        %2129 = vmatprep.subr.mxu0 0.0
        %2130 = vmatpush1.msra.mxu0 %v2116
        %2131 = vmatprep.subr.mxu0 0.0
        %2132 = vmatpush1.msra.mxu0 %v2115
        %2133 = vmatprep.subr.mxu0 0.0
        %2134 = vmatpush1.msra.mxu0 %v2114
        %2135 = vmatprep.subr.mxu0 0.0
        %2136 = vmatpush1.msra.mxu0 %v2113
        %2137 = vmatprep.subr.mxu0 0.0
        %2138 = vmatpush1.msra.mxu0 %v2112
        %2139 = vmatprep.subr.mxu0 0.0
        %2140 = vmatpush1.msra.mxu0 %v2111
        %2141 = vmatprep.subr.mxu0 0.0
        %2142 = vmatpush1.msra.mxu0 %v2110
        %2143 = vmatprep.subr.mxu0 0.0
        %2144 = vmatpush1.msra.mxu0 %v2109
        %2145 = vmatprep.subr.mxu0 0.0
        %2146 = vmatpush1.msra.mxu0 %v2108
        %2147 = vmatprep.subr.mxu0 0.0
        %2148 = vmatpush1.msra.mxu0 %v2107
        %2149 = vmatprep.subr.mxu0 0.0
        %2150 = vmatpush1.msra.mxu0 %v2106
        %2151 = vmatprep.subr.mxu0 0.0
        %2152 = vmatpush1.msra.mxu0 %v2105
        %2153 = vmatprep.subr.mxu0 0.0
        %2154 = vmatpush2.msra.mxu0 0.0
        %2155 = vmatprep.subr.mxu0 0.0
        %2156 = vmatpush2.msra.mxu0 0.0
        %2157 = vmatprep.subr.mxu0 0.0
        %2158 = vmatpush2.msra.mxu0 0.0
        %2159 = vmatprep.subr.mxu0 0.0
        %2160 = vmatpush2.msra.mxu0 0.0
        %2161 = vmatprep.subr.mxu0 0.0
        %2162 = vmatpush2.msra.mxu0 0.0
        %2163 = vmatprep.subr.mxu0 0.0
        %2164 = vmatpush2.msra.mxu0 0.0
        %2165 = vmatprep.subr.mxu0 0.0
        %2166 = vmatpush2.msra.mxu0 0.0
        %2167 = vmatprep.subr.mxu0 0.0
        %2168 = vmatpush2.msra.mxu0 0.0
        %2169 = vmatprep.subr.mxu0 0.0
        %2170 = vmatpush2.msra.mxu0 0.0
        %2171 = vmatprep.subr.mxu0 0.0
        %2172 = vmatpush2.msra.mxu0 0.0
        %2173 = vmatprep.subr.mxu0 0.0
        %2174 = vmatpush2.msra.mxu0 0.0
        %2175 = vmatprep.subr.mxu0 0.0
        %2176 = vmatpush2.msra.mxu0 0.0
        %2177 = vmatprep.subr.mxu0 0.0
        %2178 = vmatpush2.msra.mxu0 0.0
        %2179 = vmatprep.subr.mxu0 0.0
        %2180 = vmatpush2.msra.mxu0 0.0
        %2181 = vmatprep.subr.mxu0 0.0
        %2182 = vmatpush2.msra.mxu0 0.0
        %2183 = vmatprep.subr.mxu0 0.0
        %2184 = vmatpush2.msra.mxu0 0.0
        %2185 = vmatprep.mubr.f32.mxu0 0.0
        %2186 = vmatmul.mubr.f32.gmra.mxu0 %v598
        %v2187 = vpop.f32.mrf.mxu0
        %v2188 = vadd.f32 0.0, %v2187
        %v2189 = vpop.f32.mrf.mxu0
        %2190 = vdwg.mxu0
        %v2192 = vsel %vm863, %v1677, 0
        %2194 = vmatprep.subr.mxu0 0.0
        %2195 = vmatpush1.xpose.msra.mxu0 0.0
        %2196 = vmatprep.subr.mxu0 0.0
        %2197 = vmatpush1.xpose.msra.mxu0 0.0
        %2198 = vmatprep.subr.mxu0 0.0
        %2199 = vmatpush1.xpose.msra.mxu0 0.0
        %2200 = vmatprep.subr.mxu0 0.0
        %2201 = vmatpush1.xpose.msra.mxu0 0.0
        %2202 = vmatprep.subr.mxu0 0.0
        %2203 = vmatpush1.xpose.msra.mxu0 0.0
        %2204 = vmatprep.subr.mxu0 0.0
        %2205 = vmatpush1.xpose.msra.mxu0 0.0
        %2206 = vmatprep.subr.mxu0 0.0
        %2207 = vmatpush1.xpose.msra.mxu0 0.0
        %2208 = vmatprep.subr.mxu0 0.0
        %2209 = vmatpush1.xpose.msra.mxu0 0.0
        %2210 = vmatprep.subr.mxu0 0.0
        %2211 = vmatpush1.xpose.msra.mxu0 0.0
        %2212 = vmatprep.subr.mxu0 0.0
        %2213 = vmatpush1.xpose.msra.mxu0 0.0
        %2214 = vmatprep.subr.mxu0 0.0
        %2215 = vmatpush1.xpose.msra.mxu0 0.0
        %2216 = vmatprep.subr.mxu0 0.0
        %2217 = vmatpush1.xpose.msra.mxu0 0.0
        %2218 = vmatprep.subr.mxu0 0.0
        %2219 = vmatpush1.xpose.msra.mxu0 %v1958
        %2220 = vmatprep.subr.mxu0 0.0
        %2221 = vmatpush1.xpose.msra.mxu0 %v1955
        %2222 = vmatprep.subr.mxu0 0.0
        %2223 = vmatpush1.xpose.msra.mxu0 %v1952
        %2224 = vmatprep.subr.mxu0 0.0
        %2225 = vmatpush1.xpose.msra.mxu0 %v1949
        %2226 = vmatprep.subr.mxu0 0.0
        %2227 = vmatpush2.xpose.msra.mxu0 0.0
        %2228 = vmatprep.subr.mxu0 0.0
        %2229 = vmatpush2.xpose.msra.mxu0 0.0
        %2230 = vmatprep.subr.mxu0 0.0
        %2231 = vmatpush2.xpose.msra.mxu0 0.0
        %2232 = vmatprep.subr.mxu0 0.0
        %2233 = vmatpush2.xpose.msra.mxu0 0.0
        %2234 = vmatprep.subr.mxu0 0.0
        %2235 = vmatpush2.xpose.msra.mxu0 0.0
        %2236 = vmatprep.subr.mxu0 0.0
        %2237 = vmatpush2.xpose.msra.mxu0 0.0
        %2238 = vmatprep.subr.mxu0 0.0
        %2239 = vmatpush2.xpose.msra.mxu0 0.0
        %2240 = vmatprep.subr.mxu0 0.0
        %2241 = vmatpush2.xpose.msra.mxu0 0.0
        %2242 = vmatprep.subr.mxu0 0.0
        %2243 = vmatpush2.xpose.msra.mxu0 0.0
        %2244 = vmatprep.subr.mxu0 0.0
        %2245 = vmatpush2.xpose.msra.mxu0 0.0
        %2246 = vmatprep.subr.mxu0 0.0
        %2247 = vmatpush2.xpose.msra.mxu0 0.0
        %2248 = vmatprep.subr.mxu0 0.0
        %2249 = vmatpush2.xpose.msra.mxu0 0.0
        %2250 = vmatprep.subr.mxu0 0.0
        %2251 = vmatpush2.xpose.msra.mxu0 0.0
        %2252 = vmatprep.subr.mxu0 0.0
        %2253 = vmatpush2.xpose.msra.mxu0 0.0
        %2254 = vmatprep.subr.mxu0 0.0
        %2255 = vmatpush2.xpose.msra.mxu0 0.0
        %2256 = vmatprep.subr.mxu0 0.0
        %2257 = vmatpush2.xpose.msra.mxu0 0.0
        %2258 = vmatprep.mubr.f32.mxu0 0.0
        %2259 = vmatmul.mubr.f32.gmra.mxu0 %v2192
        %v2260 = vpop.f32.mrf.mxu0
        %v2261 = vadd.f32 0.0, %v2260
        %v2262 = vpop.f32.mrf.mxu0
        %2263 = vdwg.mxu0
        %v2264 = vld [vmem:[#allocation5] sm:$0xf]
        %v2265 = vmul.f32 %v2261, %v2264
        %v2266 = vadd.f32 %v2265, %v2188
        %vm2267 = vcmask 257024
        %2268 = vst.msk [vmem:[#allocation5] sm:$0xf] %vm2267, %v2266
        %2269 = vst.msk [vmem:[#allocation3] sm:$0xf] %vm1862, %v1674
        %p2270 = scmp.eq.s32.totalorder %s26, 1
        // Predicated region
        $region81: #{tpu_custom_call.1} parent=75 // pred_check
          %p2271 = pneg %p2270
        $region82: #{tpu_custom_call.1} parent=75 // pred_check_branch
          %2273 = sbr.rel (%p2271) target = $region84
        $region83: #{tpu_custom_call.1} parent=75 // pred_region
          %v2274 = vld [vmem:[#allocation4] sm:$0xf]
          %vm2275 = vcmp.gt.f32.partialorder %v2274, 0.0
          %v2276 = vrcp.pop %v2274
          %v2277 = vsel %vm2275, %v2276, 0.0
          %v2278 = vld [vmem:[%s13] sm:$0xff]
          %v2279 = vld [vmem:[%s13 + $0x8] sm:$0xff]
          %v2280 = vld [vmem:[%s13 + $0x10] sm:$0xff]
          %v2281 = vld [vmem:[%s13 + $0x18] sm:$0xff]
          %v2283 = vsel %vm863, %v2277, 0
          %v2286 = vsel %vm863, %v2278, 0
          %v2289 = vsel %vm863, %v2279, 0
          %v2292 = vsel %vm863, %v2280, 0
          %v2295 = vsel %vm863, %v2281, 0
          %2297 = vmatprep.subr.mxu0 0.0
          %2298 = vmatpush1.xpose.msra.mxu0 0.0
          %2299 = vmatprep.subr.mxu0 0.0
          %2300 = vmatpush1.xpose.msra.mxu0 0.0
          %2301 = vmatprep.subr.mxu0 0.0
          %2302 = vmatpush1.xpose.msra.mxu0 0.0
          %2303 = vmatprep.subr.mxu0 0.0
          %2304 = vmatpush1.xpose.msra.mxu0 0.0
          %2305 = vmatprep.subr.mxu0 0.0
          %2306 = vmatpush1.xpose.msra.mxu0 0.0
          %2307 = vmatprep.subr.mxu0 0.0
          %2308 = vmatpush1.xpose.msra.mxu0 0.0
          %2309 = vmatprep.subr.mxu0 0.0
          %2310 = vmatpush1.xpose.msra.mxu0 0.0
          %2311 = vmatprep.subr.mxu0 0.0
          %2312 = vmatpush1.xpose.msra.mxu0 0.0
          %2313 = vmatprep.subr.mxu0 0.0
          %2314 = vmatpush1.xpose.msra.mxu0 0.0
          %2315 = vmatprep.subr.mxu0 0.0
          %2316 = vmatpush1.xpose.msra.mxu0 0.0
          %2317 = vmatprep.subr.mxu0 0.0
          %2318 = vmatpush1.xpose.msra.mxu0 0.0
          %2319 = vmatprep.subr.mxu0 0.0
          %2320 = vmatpush1.xpose.msra.mxu0 0.0
          %2321 = vmatprep.subr.mxu0 0.0
          %2322 = vmatpush1.xpose.msra.mxu0 %v2295
          %2323 = vmatprep.subr.mxu0 0.0
          %2324 = vmatpush1.xpose.msra.mxu0 %v2292
          %2325 = vmatprep.subr.mxu0 0.0
          %2326 = vmatpush1.xpose.msra.mxu0 %v2289
          %2327 = vmatprep.subr.mxu0 0.0
          %2328 = vmatpush1.xpose.msra.mxu0 %v2286
          %2329 = vmatprep.subr.mxu0 0.0
          %2330 = vmatpush2.xpose.msra.mxu0 0.0
          %2331 = vmatprep.subr.mxu0 0.0
          %2332 = vmatpush2.xpose.msra.mxu0 0.0
          %2333 = vmatprep.subr.mxu0 0.0
          %2334 = vmatpush2.xpose.msra.mxu0 0.0
          %2335 = vmatprep.subr.mxu0 0.0
          %2336 = vmatpush2.xpose.msra.mxu0 0.0
          %2337 = vmatprep.subr.mxu0 0.0
          %2338 = vmatpush2.xpose.msra.mxu0 0.0
          %2339 = vmatprep.subr.mxu0 0.0
          %2340 = vmatpush2.xpose.msra.mxu0 0.0
          %2341 = vmatprep.subr.mxu0 0.0
          %2342 = vmatpush2.xpose.msra.mxu0 0.0
          %2343 = vmatprep.subr.mxu0 0.0
          %2344 = vmatpush2.xpose.msra.mxu0 0.0
          %2345 = vmatprep.subr.mxu0 0.0
          %2346 = vmatpush2.xpose.msra.mxu0 0.0
          %2347 = vmatprep.subr.mxu0 0.0
          %2348 = vmatpush2.xpose.msra.mxu0 0.0
          %2349 = vmatprep.subr.mxu0 0.0
          %2350 = vmatpush2.xpose.msra.mxu0 0.0
          %2351 = vmatprep.subr.mxu0 0.0
          %2352 = vmatpush2.xpose.msra.mxu0 0.0
          %2353 = vmatprep.subr.mxu0 0.0
          %2354 = vmatpush2.xpose.msra.mxu0 0.0
          %2355 = vmatprep.subr.mxu0 0.0
          %2356 = vmatpush2.xpose.msra.mxu0 0.0
          %2357 = vmatprep.subr.mxu0 0.0
          %2358 = vmatpush2.xpose.msra.mxu0 0.0
          %2359 = vmatprep.subr.mxu0 0.0
          %2360 = vmatpush2.xpose.msra.mxu0 0.0
          %2361 = vmatprep.mubr.f32.mxu0 0.0
          %2362 = vmatmul.mubr.f32.gmra.mxu0 %v2283
          %v2363 = vpop.f32.mrf.mxu0
          %v2364 = vadd.f32 0.0, %v2363
          %v2365 = vpop.f32.mrf.mxu0
          %2366 = vdwg.mxu0
          %v2367 = vld [vmem:[#allocation5] sm:$0xf]
          %v2368 = vmul.f32 %v2367, %v2364
          %v2369 = vld [vmem:[%s9] sm:$0xff]
          %v2370 = vld [vmem:[%s9 + $0x8] sm:$0xff]
          %v2371 = vld [vmem:[%s9 + $0x10] sm:$0xff]
          %v2372 = vld [vmem:[%s9 + $0x18] sm:$0xff]
          %v2373 = vld [vmem:[%s10] sm:$0x1]
          %v2375 = vlaneseq
          %v2376 = vshrl.u32 %v2375, 7
          %v2377 = vsub.s32 0, %v2376
          %v2378 = vrot.slane %v2373, %v2377
          %v2381 = vsel %vm636, %v2368, 0
          %2383 = vmatprep.subr.mxu0 0.0
          %2384 = vmatpush1.msra.mxu0 0.0
          %2385 = vmatprep.subr.mxu0 0.0
          %2386 = vmatpush1.msra.mxu0 0.0
          %2387 = vmatprep.subr.mxu0 0.0
          %2388 = vmatpush1.msra.mxu0 0.0
          %2389 = vmatprep.subr.mxu0 0.0
          %2390 = vmatpush1.msra.mxu0 0.0
          %2391 = vmatprep.subr.mxu0 0.0
          %2392 = vmatpush1.msra.mxu0 0.0
          %2393 = vmatprep.subr.mxu0 0.0
          %2394 = vmatpush1.msra.mxu0 0.0
          %2395 = vmatprep.subr.mxu0 0.0
          %2396 = vmatpush1.msra.mxu0 0.0
          %2397 = vmatprep.subr.mxu0 0.0
          %2398 = vmatpush1.msra.mxu0 0.0
          %2399 = vmatprep.subr.mxu0 0.0
          %2400 = vmatpush1.msra.mxu0 0.0
          %2401 = vmatprep.subr.mxu0 0.0
          %2402 = vmatpush1.msra.mxu0 0.0
          %2403 = vmatprep.subr.mxu0 0.0
          %2404 = vmatpush1.msra.mxu0 0.0
          %2405 = vmatprep.subr.mxu0 0.0
          %2406 = vmatpush1.msra.mxu0 0.0
          %2407 = vmatprep.subr.mxu0 0.0
          %2408 = vmatpush1.msra.mxu0 %v2372
          %2409 = vmatprep.subr.mxu0 0.0
          %2410 = vmatpush1.msra.mxu0 %v2371
          %2411 = vmatprep.subr.mxu0 0.0
          %2412 = vmatpush1.msra.mxu0 %v2370
          %2413 = vmatprep.subr.mxu0 0.0
          %2414 = vmatpush1.msra.mxu0 %v2369
          %2415 = vmatprep.subr.mxu0 0.0
          %2416 = vmatpush2.msra.mxu0 0.0
          %2417 = vmatprep.subr.mxu0 0.0
          %2418 = vmatpush2.msra.mxu0 0.0
          %2419 = vmatprep.subr.mxu0 0.0
          %2420 = vmatpush2.msra.mxu0 0.0
          %2421 = vmatprep.subr.mxu0 0.0
          %2422 = vmatpush2.msra.mxu0 0.0
          %2423 = vmatprep.subr.mxu0 0.0
          %2424 = vmatpush2.msra.mxu0 0.0
          %2425 = vmatprep.subr.mxu0 0.0
          %2426 = vmatpush2.msra.mxu0 0.0
          %2427 = vmatprep.subr.mxu0 0.0
          %2428 = vmatpush2.msra.mxu0 0.0
          %2429 = vmatprep.subr.mxu0 0.0
          %2430 = vmatpush2.msra.mxu0 0.0
          %2431 = vmatprep.subr.mxu0 0.0
          %2432 = vmatpush2.msra.mxu0 0.0
          %2433 = vmatprep.subr.mxu0 0.0
          %2434 = vmatpush2.msra.mxu0 0.0
          %2435 = vmatprep.subr.mxu0 0.0
          %2436 = vmatpush2.msra.mxu0 0.0
          %2437 = vmatprep.subr.mxu0 0.0
          %2438 = vmatpush2.msra.mxu0 0.0
          %2439 = vmatprep.subr.mxu0 0.0
          %2440 = vmatpush2.msra.mxu0 0.0
          %2441 = vmatprep.subr.mxu0 0.0
          %2442 = vmatpush2.msra.mxu0 0.0
          %2443 = vmatprep.subr.mxu0 0.0
          %2444 = vmatpush2.msra.mxu0 0.0
          %2445 = vmatprep.subr.mxu0 0.0
          %2446 = vmatpush2.msra.mxu0 0.0
          %2447 = vmatprep.mubr.f32.mxu0 0.0
          %2448 = vmatmul.mubr.f32.gmra.mxu0 %v2381
          %v2449 = vpop.f32.mrf.mxu0
          %v2450 = vadd.f32 %v2378, %v2449
          %v2451 = vpop.f32.mrf.mxu0
          %2452 = vdwg.mxu0
          %2453 = vst.msk [vmem:[#allocation6] sm:$0xf] %vm2267, %v2450
        $region84: #{tpu_custom_call.1} parent=75 // pred_fallthru
          _
        // Predicated region
        $region85: #{tpu_custom_call.1} parent=75 // pred_check
          %p2454 = pneg %p348
        $region86: #{tpu_custom_call.1} parent=75 // pred_check_branch
          %2456 = sbr.rel (%p2454) target = $region88
        $region87: #{tpu_custom_call.1} parent=75 // pred_region
          %s2458 = ssub.s32 64, 64
          %2459 = vsyncadd [#allocation7], %s2458
          %s2461 = sshll.u32 [#allocation6], 4
          %s2462 = int_to_ptr.vmem [resolvable:$true] %s2461
          %2464 = dma.vmem_to_hbm [thread:$0]  %s2462, 64, %s14, [#allocation7]
        $region88: #{tpu_custom_call.1} parent=75 // pred_fallthru
          _
        // Predicated region
        $region89: #{tpu_custom_call.1} parent=75 // pred_check
          %p2465 = pneg %p348
        $region90: #{tpu_custom_call.1} parent=75 // pred_check_branch
          %2467 = sbr.rel (%p2465) target = $region92
        $region91: #{tpu_custom_call.1} parent=75 // pred_region
          %2468 = dma.done [#allocation7], 64
        $region92: #{tpu_custom_call.1} parent=75 // pred_fallthru
          _
      $region76: #{tpu_custom_call.1} parent=5 // pred_fallthru
        _
      %p2469 = scmp.le.s32.totalorder 2, %s21
      // Predicated region
      $region93: #{tpu_custom_call.1} parent=5 // pred_check
        %p2470 = pneg %p2469
      $region94: #{tpu_custom_call.1} parent=5 // pred_check_branch
        %2472 = sbr.rel (%p2470) target = $region96
      $region95: #{tpu_custom_call.1} parent=5 // pred_region
        %s2473 = ssub.s32 %s21, 2
      $region96: #{tpu_custom_call.1} parent=5 // pred_fallthru
        _
    $region6: #{tpu_custom_call.1} parent=1 // loop_footer
      %s25 = sadd.s32 1, %s21
    $region7: #{tpu_custom_call.1} parent=1 // loop_footer_branch
      %20 = sbr.rel target = $region3
    $region8: #{tpu_custom_call.1} parent=1 // loop_exit
      _
    %2474 = vsyncpa [#allocation7], 1
    %s2475 = scalar_lea.sflag [#allocation7], 1
    %2476 = vsyncpa %s2475, 1

</llo_original>
